<compile_context>
chip_gen: v7x
topology: tpu7x:2x2x1
jax: 0.10.0
libtpu: 0.0.40
codegen_flags: <defaults>
</compile_context>

<pallas_src>
import functools
import math

import jax
import jax.numpy as jnp
import numpy as np
from jax import lax
from jax.experimental import pallas as pl
from jax.experimental.pallas import tpu as pltpu


def _round_up(x, m):
    return ((x + m - 1) // m) * m


def _lstm_kernel(n_steps_ref,                 # SMEM (1,) int32   (scalar prefetch)
                 x_ref,                       # (Tc, B, 1)  input chunk, time-major
                 w_ih_ref,                    # (1, 4H)     weight_ih_l0^T (I == 1)
                 w_hh_ref,                    # (H, 4H)     weight_hh_l0^T
                 b_ref,                       # (1, 4H)     b_ih + b_hh
                 w_fc_ref,                    # (1, H)      fc.weight
                 b_fc_ref,                    # (1, 1)      fc.bias
                 h0_ref, c0_ref,              # (B, H)      initial state
                 out_ref,                     # (Tc, B)     tanh(fc(h_t)) chunk
                 h_state_ref, c_state_ref,    # (B, H)      carried/final state (revisited block)
                 gx_scr,                      # (Tc, B, 4H) hoisted input projection
                 hist_scr,                    # (Tc, B, H)  h_t history for the fc pass
                 *, apply_mask):
    Tc = x_ref.shape[0]
    H = h_state_ref.shape[-1]
    chunk = pl.program_id(0)

    @pl.when(chunk == 0)
    def _init():
        h_state_ref[...] = h0_ref[...]
        c_state_ref[...] = c0_ref[...]

    # Hoisted input projection: x_t @ W_ih^T is a rank-1 outer product because
    # input_size == 1, so it is a single broadcast multiply for the whole chunk.
    gx_scr[...] = x_ref[...] * w_ih_ref[...][None] + b_ref[...][None]

    w_hh = w_hh_ref[...]
    base_t = chunk * Tc
    n_steps = n_steps_ref[0]

    def step(t, carry):
        h = h_state_ref[...]
        c = c_state_ref[...]
        gates = (jnp.dot(h.astype(w_hh.dtype), w_hh,
                         preferred_element_type=jnp.float32)
                 + gx_scr[t])                                    # (B, 4H)
        # Full-vreg activations; PyTorch gate order i, f, g, o along the 4H axis.
        sig = jax.nn.sigmoid(gates)
        tnh = jnp.tanh(gates)
        i_g = sig[:, 0 * H:1 * H]
        f_g = sig[:, 1 * H:2 * H]
        g_g = tnh[:, 2 * H:3 * H]
        o_g = sig[:, 3 * H:4 * H]
        c_new = f_g * c + i_g * g_g
        h_new = o_g * jnp.tanh(c_new)
        hist_scr[t] = h_new
        if apply_mask:
            # Freeze the carried state on padded tail steps (t >= seq_len).
            valid = ((base_t + t) < n_steps).astype(jnp.float32)
            h_state_ref[...] = valid * h_new + (1.0 - valid) * h
            c_state_ref[...] = valid * c_new + (1.0 - valid) * c
        else:
            h_state_ref[...] = h_new
            c_state_ref[...] = c_new
        return carry

    lax.fori_loop(0, Tc, step, 0, unroll=8)

    # fc + tanh for the whole chunk at once, one bulk store (out of the serial loop).
    y = jnp.sum(hist_scr[...] * w_fc_ref[...][None], axis=-1) + b_fc_ref[...]
    out_ref[...] = jnp.tanh(y)


def init_params(key, n_hidden, input_size=1):
    """Init mirroring nn.LSTM(input_size=1, hidden_size=n_hidden) + nn.Linear(n_hidden, 1)."""
    k = 1.0 / math.sqrt(n_hidden)
    ks = jax.random.split(key, 6)
    return dict(
        w_ih=jax.random.uniform(ks[0], (4 * n_hidden, input_size), jnp.float32, -k, k),
        w_hh=jax.random.uniform(ks[1], (4 * n_hidden, n_hidden), jnp.float32, -k, k),
        b_ih=jax.random.uniform(ks[2], (4 * n_hidden,), jnp.float32, -k, k),
        b_hh=jax.random.uniform(ks[3], (4 * n_hidden,), jnp.float32, -k, k),
        w_fc=jax.random.uniform(ks[4], (1, n_hidden), jnp.float32, -k, k),
        b_fc=jax.random.uniform(ks[5], (1,), jnp.float32, -k, k),
    )


_T_CHUNK = 128   # time-steps per grid step (multiple of 8)


@functools.partial(jax.jit, static_argnames=("recurrent_dtype",))
def lstm_forward(x, params, h0=None, c0=None, *, recurrent_dtype=jnp.float32):
    """Pallas equivalent of `LSTM.forward(x, h_c)`.

    x: (B, T, 1) float32 (batch_first). Returns (out, (h, c)) with out (B, T, 1),
    h (1, B, H), c (1, B, H).  recurrent_dtype=jnp.bfloat16 feeds bf16 operands to
    the recurrent matmul (v6e/v7x MXU lever) while keeping state/gates in f32.
    """
    B, T, I = x.shape
    assert I == 1, "module is defined with input_size == 1"
    H = params["w_hh"].shape[1]
    G = 4 * H

    if h0 is None:
        h0 = jnp.zeros((B, H), jnp.float32)
    else:
        h0 = jnp.asarray(h0, jnp.float32)
        h0 = h0[0] if h0.ndim == 3 else h0
    if c0 is None:
        c0 = jnp.zeros((B, H), jnp.float32)
    else:
        c0 = jnp.asarray(c0, jnp.float32)
        c0 = c0[0] if c0.ndim == 3 else c0

    # Time-major input, T padded to a whole number of chunks.
    Tc = min(_T_CHUNK, _round_up(T, 8))
    T_pad = _round_up(T, Tc)
    num_chunks = T_pad // Tc
    x_tm = jnp.transpose(x, (1, 0, 2)).astype(jnp.float32)           # (T, B, 1)
    if T_pad != T:
        x_tm = jnp.pad(x_tm, ((0, T_pad - T), (0, 0), (0, 0)))

    w_ih_row = params["w_ih"].reshape(1, G).astype(jnp.float32)      # (4H,1) -> (1,4H)
    w_hh_t = params["w_hh"].T.astype(recurrent_dtype)                # (H, 4H)
    b = (params["b_ih"] + params["b_hh"]).reshape(1, G).astype(jnp.float32)
    w_fc = params["w_fc"].reshape(1, H).astype(jnp.float32)
    b_fc = params["b_fc"].reshape(1, 1).astype(jnp.float32)
    n_steps = jnp.array([T], jnp.int32)

    kernel = functools.partial(_lstm_kernel, apply_mask=(T_pad != T))

    grid_spec = pltpu.PrefetchScalarGridSpec(
        num_scalar_prefetch=1,
        grid=(num_chunks,),
        in_specs=[
            pl.BlockSpec((Tc, B, 1), lambda t, n: (t, 0, 0)),   # x chunk
            pl.BlockSpec((1, G), lambda t, n: (0, 0)),          # w_ih (row)
            pl.BlockSpec((H, G), lambda t, n: (0, 0)),          # w_hh
            pl.BlockSpec((1, G), lambda t, n: (0, 0)),          # fused bias
            pl.BlockSpec((1, H), lambda t, n: (0, 0)),          # fc weight
            pl.BlockSpec((1, 1), lambda t, n: (0, 0)),          # fc bias
            pl.BlockSpec((B, H), lambda t, n: (0, 0)),          # h0
            pl.BlockSpec((B, H), lambda t, n: (0, 0)),          # c0
        ],
        out_specs=(
            pl.BlockSpec((Tc, B), lambda t, n: (t, 0)),         # out chunk (time-major)
            pl.BlockSpec((B, H), lambda t, n: (0, 0)),          # final h (revisited)
            pl.BlockSpec((B, H), lambda t, n: (0, 0)),          # final c (revisited)
        ),
        scratch_shapes=[
            pltpu.VMEM((Tc, B, G), jnp.float32),                # hoisted input projection
            pltpu.VMEM((Tc, B, H), jnp.float32),                # h_t history for fc
        ],
    )

    cost = pl.CostEstimate(
        flops=2 * T * B * H * G + 2 * T * B * G + 8 * T * B * H,
        transcendentals=T * B * (2 * G + H + 1),
        bytes_accessed=4 * (2 * T_pad * B + H * G + 3 * G + H + 1 + 4 * B * H),
    )

    out_tm, h_f, c_f = pl.pallas_call(
        kernel,
        out_shape=(
            jax.ShapeDtypeStruct((T_pad, B), jnp.float32),
            jax.ShapeDtypeStruct((B, H), jnp.float32),
            jax.ShapeDtypeStruct((B, H), jnp.float32),
        ),
        grid_spec=grid_spec,
        compiler_params=pltpu.CompilerParams(
            dimension_semantics=("arbitrary",)),     # sequential recurrence across chunks
        cost_estimate=cost,
    )(n_steps, x_tm, w_ih_row, w_hh_t, b, w_fc, b_fc, h0, c0)

    out = jnp.transpose(out_tm[:T], (1, 0))[..., None]               # (B, T, 1)
    return out, (h_f[None], c_f[None])


def _lstm_reference(x, params, h0, c0):
    """Pure-JAX (lax.scan) reference of nn.LSTM + Linear + tanh."""
    H = params["w_hh"].shape[1]
    w_ih, w_hh = params["w_ih"], params["w_hh"]
    bias = params["b_ih"] + params["b_hh"]
    hp = jax.lax.Precision.HIGHEST

    def step(carry, x_t):
        h, c = carry
        gates = (jnp.dot(x_t, w_ih.T, precision=hp)
                 + jnp.dot(h, w_hh.T, precision=hp) + bias)
        i = jax.nn.sigmoid(gates[:, :H])
        f = jax.nn.sigmoid(gates[:, H:2 * H])
        g = jnp.tanh(gates[:, 2 * H:3 * H])
        o = jax.nn.sigmoid(gates[:, 3 * H:])
        c = f * c + i * g
        h = o * jnp.tanh(c)
        return (h, c), h

    (h, c), hs = lax.scan(step, (h0, c0), jnp.transpose(x, (1, 0, 2)))
    y = jnp.tanh(jnp.dot(hs, params["w_fc"].T, precision=hp) + params["b_fc"])
    return jnp.transpose(y, (1, 0, 2)), (h[None], c[None])


if __name__ == "__main__":
    key = jax.random.PRNGKey(0)
    k_x, k_p, k_x2 = jax.random.split(key, 3)

    batch, seq, n_hidden = 2, 8, 32
    params = init_params(k_p, n_hidden)

    x = jax.random.normal(k_x, (batch, seq, 1), jnp.float32)
    out, (h, c) = lstm_forward(x, params)
    jax.block_until_ready((out, h, c))

    assert out.shape == (batch, seq, 1)
    assert h.shape == (1, batch, n_hidden)
    assert c.shape == (1, batch, n_hidden)

    zeros = jnp.zeros((batch, n_hidden), jnp.float32)
    out_e, (h_e, c_e) = _lstm_reference(x, params, zeros, zeros)
    np.testing.assert_allclose(np.asarray(out), np.asarray(out_e), atol=2e-3, rtol=2e-3)
    np.testing.assert_allclose(np.asarray(h), np.asarray(h_e), atol=2e-3, rtol=2e-3)
    np.testing.assert_allclose(np.asarray(c), np.asarray(c_e), atol=2e-3, rtol=2e-3)

    # Exercise the multi-chunk grid + padded-tail masking path (T > one chunk).
    seq2 = 160
    x2 = jax.random.normal(k_x2, (batch, seq2, 1), jnp.float32)
    out2, (h2, c2) = lstm_forward(x2, params)
    jax.block_until_ready((out2, h2, c2))
    out2_e, (h2_e, c2_e) = _lstm_reference(x2, params, zeros, zeros)
    np.testing.assert_allclose(np.asarray(out2), np.asarray(out2_e), atol=2e-3, rtol=2e-3)
    np.testing.assert_allclose(np.asarray(h2), np.asarray(h2_e), atol=2e-3, rtol=2e-3)
    np.testing.assert_allclose(np.asarray(c2), np.asarray(c2_e), atol=2e-3, rtol=2e-3)

    print("KERNEL_OK")
</pallas_src>

<mosaic_0001>
module attributes {stable_mosaic.version = 11 : i64} {
  func.func @_lstm_kernel(%arg0: i32, %arg1: memref<1xi32, #tpu.memory_space<smem>>, %arg2: memref<8x2x1xf32, #tpu.memory_space<vmem>>, %arg3: memref<1x128xf32, #tpu.memory_space<vmem>>, %arg4: memref<32x128xf32, #tpu.memory_space<vmem>>, %arg5: memref<1x128xf32, #tpu.memory_space<vmem>>, %arg6: memref<1x32xf32, #tpu.memory_space<vmem>>, %arg7: memref<1x1xf32, #tpu.memory_space<vmem>>, %arg8: memref<2x32xf32, #tpu.memory_space<vmem>>, %arg9: memref<2x32xf32, #tpu.memory_space<vmem>>, %arg10: memref<8x2xf32, #tpu.memory_space<vmem>>, %arg11: memref<2x32xf32, #tpu.memory_space<vmem>>, %arg12: memref<2x32xf32, #tpu.memory_space<vmem>>, %arg13: memref<8x2x128xf32, #tpu.memory_space<vmem>>, %arg14: memref<8x2x32xf32, #tpu.memory_space<vmem>>) attributes {dimension_semantics = [#tpu.dimension_semantics<arbitrary>], iteration_bounds = array<i64: 1>, scalar_prefetch = 1 : i64, scratch_operands = 2 : i64, tpu.core_type = #tpu.core_type<tc>, window_params = [{transform_indices = @transform_0, window_bounds = array<i64: 8, 2, 1>}, {pipeline_mode = #tpu.pipeline_mode<synchronous>, transform_indices = @transform_1, window_bounds = array<i64: 1, 128>}, {pipeline_mode = #tpu.pipeline_mode<synchronous>, transform_indices = @transform_2, window_bounds = array<i64: 32, 128>}, {pipeline_mode = #tpu.pipeline_mode<synchronous>, transform_indices = @transform_3, window_bounds = array<i64: 1, 128>}, {pipeline_mode = #tpu.pipeline_mode<synchronous>, transform_indices = @transform_4, window_bounds = array<i64: 1, 32>}, {pipeline_mode = #tpu.pipeline_mode<synchronous>, transform_indices = @transform_5, window_bounds = array<i64: 1, 1>}, {pipeline_mode = #tpu.pipeline_mode<synchronous>, transform_indices = @transform_6, window_bounds = array<i64: 2, 32>}, {pipeline_mode = #tpu.pipeline_mode<synchronous>, transform_indices = @transform_7, window_bounds = array<i64: 2, 32>}, {transform_indices = @transform_8, window_bounds = array<i64: 8, 2>}, {pipeline_mode = #tpu.pipeline_mode<synchronous>, transform_indices = @transform_9, window_bounds = array<i64: 2, 32>}, {pipeline_mode = #tpu.pipeline_mode<synchronous>, transform_indices = @transform_10, window_bounds = array<i64: 2, 32>}]} {
    %c0_i32 = arith.constant 0 : i32
    %0 = arith.cmpi eq, %arg0, %c0_i32 : i32
    %1 = arith.extui %0 : i1 to i32
    %c0_i32_0 = arith.constant 0 : i32
    %2 = arith.cmpi ne, %1, %c0_i32_0 : i32
    scf.if %2 {
      %c0_134 = arith.constant 0 : index
      %c0_135 = arith.constant 0 : index
      %250 = vector.load %arg8[%c0_134, %c0_135] : memref<2x32xf32, #tpu.memory_space<vmem>>, vector<2x32xf32>
      %c0_136 = arith.constant 0 : index
      %c0_137 = arith.constant 0 : index
      %251 = vector.load %arg11[%c0_136, %c0_137] : memref<2x32xf32, #tpu.memory_space<vmem>>, vector<2x32xf32>
      tpu.vector_store %arg11[%c0_136, %c0_137], %250 {strides = array<i32>} : memref<2x32xf32, #tpu.memory_space<vmem>>, vector<2x32xf32>,
      %c0_138 = arith.constant 0 : index
      %c0_139 = arith.constant 0 : index
      %252 = vector.load %arg9[%c0_138, %c0_139] : memref<2x32xf32, #tpu.memory_space<vmem>>, vector<2x32xf32>
      %c0_140 = arith.constant 0 : index
      %c0_141 = arith.constant 0 : index
      %253 = vector.load %arg12[%c0_140, %c0_141] : memref<2x32xf32, #tpu.memory_space<vmem>>, vector<2x32xf32>
      tpu.vector_store %arg12[%c0_140, %c0_141], %252 {strides = array<i32>} : memref<2x32xf32, #tpu.memory_space<vmem>>, vector<2x32xf32>,
    } else {
    }
    %c0 = arith.constant 0 : index
    %c0_1 = arith.constant 0 : index
    %c0_2 = arith.constant 0 : index
    %3 = vector.load %arg2[%c0, %c0_1, %c0_2] : memref<8x2x1xf32, #tpu.memory_space<vmem>>, vector<8x2x1xf32>
    %c0_3 = arith.constant 0 : index
    %c0_4 = arith.constant 0 : index
    %4 = vector.load %arg3[%c0_3, %c0_4] : memref<1x128xf32, #tpu.memory_space<vmem>>, vector<1x128xf32>
    %5 = vector.shape_cast %4 : vector<1x128xf32> to vector<1x1x128xf32>
    %6 = vector.broadcast %3 : vector<8x2x1xf32> to vector<8x2x128xf32>
    %7 = vector.broadcast %5 : vector<1x1x128xf32> to vector<8x2x128xf32>
    %8 = arith.mulf %6, %7 : vector<8x2x128xf32>
    %c0_5 = arith.constant 0 : index
    %c0_6 = arith.constant 0 : index
    %9 = vector.load %arg5[%c0_5, %c0_6] : memref<1x128xf32, #tpu.memory_space<vmem>>, vector<1x128xf32>
    %10 = vector.shape_cast %9 : vector<1x128xf32> to vector<1x1x128xf32>
    %11 = vector.broadcast %10 : vector<1x1x128xf32> to vector<8x2x128xf32>
    %12 = arith.addf %8, %11 : vector<8x2x128xf32>
    %c0_7 = arith.constant 0 : index
    %c0_8 = arith.constant 0 : index
    %c0_9 = arith.constant 0 : index
    %13 = vector.load %arg13[%c0_7, %c0_8, %c0_9] : memref<8x2x128xf32, #tpu.memory_space<vmem>>, vector<8x2x128xf32>
    tpu.vector_store %arg13[%c0_7, %c0_8, %c0_9], %12 {strides = array<i32>} : memref<8x2x128xf32, #tpu.memory_space<vmem>>, vector<8x2x128xf32>,
    %c0_10 = arith.constant 0 : index
    %c0_11 = arith.constant 0 : index
    %14 = vector.load %arg4[%c0_10, %c0_11] : memref<32x128xf32, #tpu.memory_space<vmem>>, vector<32x128xf32>
    %c0_i32_12 = arith.constant 0 : i32
    %c0_13 = arith.constant 0 : index
    %c0_14 = arith.constant 0 : index
    %15 = vector.load %arg11[%c0_13, %c0_14] : memref<2x32xf32, #tpu.memory_space<vmem>>, vector<2x32xf32>
    %c0_15 = arith.constant 0 : index
    %c0_16 = arith.constant 0 : index
    %16 = vector.load %arg12[%c0_15, %c0_16] : memref<2x32xf32, #tpu.memory_space<vmem>>, vector<2x32xf32>
    %cst = arith.constant dense<0.000000e+00> : vector<2x128xf32>
    %17 = tpu.matmul %15, %14, %cst {dimension_numbers = #tpu.dot_dimension_numbers<[1], [0], [0], [1], [0, 0, 1, 1], [], []>} : vector<2x32xf32>, vector<32x128xf32>, vector<2x128xf32> -> vector<2x128xf32>
    %18 = arith.index_cast %c0_i32_12 : i32 to index
    %c0_17 = arith.constant 0 : index
    %c0_18 = arith.constant 0 : index
    %19 = vector.load %arg13[%18, %c0_17, %c0_18] : memref<8x2x128xf32, #tpu.memory_space<vmem>>, vector<1x2x128xf32>
    %20 = vector.shape_cast %19 : vector<1x2x128xf32> to vector<2x128xf32>
    %21 = arith.addf %17, %20 : vector<2x128xf32>
    %22 = arith.negf %21 : vector<2x128xf32>
    %23 = math.exp %22 : vector<2x128xf32>
    %cst_19 = arith.constant 1.000000e+00 : f32
    %24 = vector.broadcast %cst_19 : f32 to vector<2x128xf32>
    %25 = arith.addf %24, %23 : vector<2x128xf32>
    %26 = arith.divf %24, %25 : vector<2x128xf32>
    %27 = math.tanh %21 : vector<2x128xf32>
    %28 = vector.extract_strided_slice %26 {offsets = [0, 0], sizes = [2, 32], strides = [1, 1]} : vector<2x128xf32> to vector<2x32xf32>
    %29 = vector.extract_strided_slice %26 {offsets = [0, 32], sizes = [2, 32], strides = [1, 1]} : vector<2x128xf32> to vector<2x32xf32>
    %30 = vector.extract_strided_slice %27 {offsets = [0, 64], sizes = [2, 32], strides = [1, 1]} : vector<2x128xf32> to vector<2x32xf32>
    %31 = vector.extract_strided_slice %26 {offsets = [0, 96], sizes = [2, 32], strides = [1, 1]} : vector<2x128xf32> to vector<2x32xf32>
    %32 = arith.mulf %29, %16 : vector<2x32xf32>
    %33 = arith.mulf %28, %30 : vector<2x32xf32>
    %34 = arith.addf %32, %33 : vector<2x32xf32>
    %35 = math.tanh %34 : vector<2x32xf32>
    %36 = arith.mulf %31, %35 : vector<2x32xf32>
    %37 = arith.index_cast %c0_i32_12 : i32 to index
    %c0_20 = arith.constant 0 : index
    %c0_21 = arith.constant 0 : index
    %38 = vector.load %arg14[%37, %c0_20, %c0_21] : memref<8x2x32xf32, #tpu.memory_space<vmem>>, vector<1x2x32xf32>
    %39 = vector.shape_cast %38 : vector<1x2x32xf32> to vector<2x32xf32>
    %40 = vector.shape_cast %36 : vector<2x32xf32> to vector<1x2x32xf32>
    tpu.vector_store %arg14[%37, %c0_20, %c0_21], %40 {strides = array<i32>} : memref<8x2x32xf32, #tpu.memory_space<vmem>>, vector<1x2x32xf32>,
    %c0_22 = arith.constant 0 : index
    %c0_23 = arith.constant 0 : index
    %41 = vector.load %arg11[%c0_22, %c0_23] : memref<2x32xf32, #tpu.memory_space<vmem>>, vector<2x32xf32>
    tpu.vector_store %arg11[%c0_22, %c0_23], %36 {strides = array<i32>} : memref<2x32xf32, #tpu.memory_space<vmem>>, vector<2x32xf32>,
    %c0_24 = arith.constant 0 : index
    %c0_25 = arith.constant 0 : index
    %42 = vector.load %arg12[%c0_24, %c0_25] : memref<2x32xf32, #tpu.memory_space<vmem>>, vector<2x32xf32>
    tpu.vector_store %arg12[%c0_24, %c0_25], %34 {strides = array<i32>} : memref<2x32xf32, #tpu.memory_space<vmem>>, vector<2x32xf32>,
    %c1_i32 = arith.constant 1 : i32
    %c0_26 = arith.constant 0 : index
    %c0_27 = arith.constant 0 : index
    %43 = vector.load %arg11[%c0_26, %c0_27] : memref<2x32xf32, #tpu.memory_space<vmem>>, vector<2x32xf32>
    %c0_28 = arith.constant 0 : index
    %c0_29 = arith.constant 0 : index
    %44 = vector.load %arg12[%c0_28, %c0_29] : memref<2x32xf32, #tpu.memory_space<vmem>>, vector<2x32xf32>
    %cst_30 = arith.constant dense<0.000000e+00> : vector<2x128xf32>
    %45 = tpu.matmul %43, %14, %cst_30 {dimension_numbers = #tpu.dot_dimension_numbers<[1], [0], [0], [1], [0, 0, 1, 1], [], []>} : vector<2x32xf32>, vector<32x128xf32>, vector<2x128xf32> -> vector<2x128xf32>
    %46 = arith.index_cast %c1_i32 : i32 to index
    %c0_31 = arith.constant 0 : index
    %c0_32 = arith.constant 0 : index
    %47 = vector.load %arg13[%46, %c0_31, %c0_32] : memref<8x2x128xf32, #tpu.memory_space<vmem>>, vector<1x2x128xf32>
    %48 = vector.shape_cast %47 : vector<1x2x128xf32> to vector<2x128xf32>
    %49 = arith.addf %45, %48 : vector<2x128xf32>
    %50 = arith.negf %49 : vector<2x128xf32>
    %51 = math.exp %50 : vector<2x128xf32>
    %cst_33 = arith.constant 1.000000e+00 : f32
    %52 = vector.broadcast %cst_33 : f32 to vector<2x128xf32>
    %53 = arith.addf %52, %51 : vector<2x128xf32>
    %54 = arith.divf %52, %53 : vector<2x128xf32>
    %55 = math.tanh %49 : vector<2x128xf32>
    %56 = vector.extract_strided_slice %54 {offsets = [0, 0], sizes = [2, 32], strides = [1, 1]} : vector<2x128xf32> to vector<2x32xf32>
    %57 = vector.extract_strided_slice %54 {offsets = [0, 32], sizes = [2, 32], strides = [1, 1]} : vector<2x128xf32> to vector<2x32xf32>
    %58 = vector.extract_strided_slice %55 {offsets = [0, 64], sizes = [2, 32], strides = [1, 1]} : vector<2x128xf32> to vector<2x32xf32>
    %59 = vector.extract_strided_slice %54 {offsets = [0, 96], sizes = [2, 32], strides = [1, 1]} : vector<2x128xf32> to vector<2x32xf32>
    %60 = arith.mulf %57, %44 : vector<2x32xf32>
    %61 = arith.mulf %56, %58 : vector<2x32xf32>
    %62 = arith.addf %60, %61 : vector<2x32xf32>
    %63 = math.tanh %62 : vector<2x32xf32>
    %64 = arith.mulf %59, %63 : vector<2x32xf32>
    %65 = arith.index_cast %c1_i32 : i32 to index
    %c0_34 = arith.constant 0 : index
    %c0_35 = arith.constant 0 : index
    %66 = vector.load %arg14[%65, %c0_34, %c0_35] : memref<8x2x32xf32, #tpu.memory_space<vmem>>, vector<1x2x32xf32>
    %67 = vector.shape_cast %66 : vector<1x2x32xf32> to vector<2x32xf32>
    %68 = vector.shape_cast %64 : vector<2x32xf32> to vector<1x2x32xf32>
    tpu.vector_store %arg14[%65, %c0_34, %c0_35], %68 {strides = array<i32>} : memref<8x2x32xf32, #tpu.memory_space<vmem>>, vector<1x2x32xf32>,
    %c0_36 = arith.constant 0 : index
    %c0_37 = arith.constant 0 : index
    %69 = vector.load %arg11[%c0_36, %c0_37] : memref<2x32xf32, #tpu.memory_space<vmem>>, vector<2x32xf32>
    tpu.vector_store %arg11[%c0_36, %c0_37], %64 {strides = array<i32>} : memref<2x32xf32, #tpu.memory_space<vmem>>, vector<2x32xf32>,
    %c0_38 = arith.constant 0 : index
    %c0_39 = arith.constant 0 : index
    %70 = vector.load %arg12[%c0_38, %c0_39] : memref<2x32xf32, #tpu.memory_space<vmem>>, vector<2x32xf32>
    tpu.vector_store %arg12[%c0_38, %c0_39], %62 {strides = array<i32>} : memref<2x32xf32, #tpu.memory_space<vmem>>, vector<2x32xf32>,
    %c2_i32 = arith.constant 2 : i32
    %c0_40 = arith.constant 0 : index
    %c0_41 = arith.constant 0 : index
    %71 = vector.load %arg11[%c0_40, %c0_41] : memref<2x32xf32, #tpu.memory_space<vmem>>, vector<2x32xf32>
    %c0_42 = arith.constant 0 : index
    %c0_43 = arith.constant 0 : index
    %72 = vector.load %arg12[%c0_42, %c0_43] : memref<2x32xf32, #tpu.memory_space<vmem>>, vector<2x32xf32>
    %cst_44 = arith.constant dense<0.000000e+00> : vector<2x128xf32>
    %73 = tpu.matmul %71, %14, %cst_44 {dimension_numbers = #tpu.dot_dimension_numbers<[1], [0], [0], [1], [0, 0, 1, 1], [], []>} : vector<2x32xf32>, vector<32x128xf32>, vector<2x128xf32> -> vector<2x128xf32>
    %74 = arith.index_cast %c2_i32 : i32 to index
    %c0_45 = arith.constant 0 : index
    %c0_46 = arith.constant 0 : index
    %75 = vector.load %arg13[%74, %c0_45, %c0_46] : memref<8x2x128xf32, #tpu.memory_space<vmem>>, vector<1x2x128xf32>
    %76 = vector.shape_cast %75 : vector<1x2x128xf32> to vector<2x128xf32>
    %77 = arith.addf %73, %76 : vector<2x128xf32>
    %78 = arith.negf %77 : vector<2x128xf32>
    %79 = math.exp %78 : vector<2x128xf32>
    %cst_47 = arith.constant 1.000000e+00 : f32
    %80 = vector.broadcast %cst_47 : f32 to vector<2x128xf32>
    %81 = arith.addf %80, %79 : vector<2x128xf32>
    %82 = arith.divf %80, %81 : vector<2x128xf32>
    %83 = math.tanh %77 : vector<2x128xf32>
    %84 = vector.extract_strided_slice %82 {offsets = [0, 0], sizes = [2, 32], strides = [1, 1]} : vector<2x128xf32> to vector<2x32xf32>
    %85 = vector.extract_strided_slice %82 {offsets = [0, 32], sizes = [2, 32], strides = [1, 1]} : vector<2x128xf32> to vector<2x32xf32>
    %86 = vector.extract_strided_slice %83 {offsets = [0, 64], sizes = [2, 32], strides = [1, 1]} : vector<2x128xf32> to vector<2x32xf32>
    %87 = vector.extract_strided_slice %82 {offsets = [0, 96], sizes = [2, 32], strides = [1, 1]} : vector<2x128xf32> to vector<2x32xf32>
    %88 = arith.mulf %85, %72 : vector<2x32xf32>
    %89 = arith.mulf %84, %86 : vector<2x32xf32>
    %90 = arith.addf %88, %89 : vector<2x32xf32>
    %91 = math.tanh %90 : vector<2x32xf32>
    %92 = arith.mulf %87, %91 : vector<2x32xf32>
    %93 = arith.index_cast %c2_i32 : i32 to index
    %c0_48 = arith.constant 0 : index
    %c0_49 = arith.constant 0 : index
    %94 = vector.load %arg14[%93, %c0_48, %c0_49] : memref<8x2x32xf32, #tpu.memory_space<vmem>>, vector<1x2x32xf32>
    %95 = vector.shape_cast %94 : vector<1x2x32xf32> to vector<2x32xf32>
    %96 = vector.shape_cast %92 : vector<2x32xf32> to vector<1x2x32xf32>
    tpu.vector_store %arg14[%93, %c0_48, %c0_49], %96 {strides = array<i32>} : memref<8x2x32xf32, #tpu.memory_space<vmem>>, vector<1x2x32xf32>,
    %c0_50 = arith.constant 0 : index
    %c0_51 = arith.constant 0 : index
    %97 = vector.load %arg11[%c0_50, %c0_51] : memref<2x32xf32, #tpu.memory_space<vmem>>, vector<2x32xf32>
    tpu.vector_store %arg11[%c0_50, %c0_51], %92 {strides = array<i32>} : memref<2x32xf32, #tpu.memory_space<vmem>>, vector<2x32xf32>,
    %c0_52 = arith.constant 0 : index
    %c0_53 = arith.constant 0 : index
    %98 = vector.load %arg12[%c0_52, %c0_53] : memref<2x32xf32, #tpu.memory_space<vmem>>, vector<2x32xf32>
    tpu.vector_store %arg12[%c0_52, %c0_53], %90 {strides = array<i32>} : memref<2x32xf32, #tpu.memory_space<vmem>>, vector<2x32xf32>,
    %c3_i32 = arith.constant 3 : i32
    %c0_54 = arith.constant 0 : index
    %c0_55 = arith.constant 0 : index
    %99 = vector.load %arg11[%c0_54, %c0_55] : memref<2x32xf32, #tpu.memory_space<vmem>>, vector<2x32xf32>
    %c0_56 = arith.constant 0 : index
    %c0_57 = arith.constant 0 : index
    %100 = vector.load %arg12[%c0_56, %c0_57] : memref<2x32xf32, #tpu.memory_space<vmem>>, vector<2x32xf32>
    %cst_58 = arith.constant dense<0.000000e+00> : vector<2x128xf32>
    %101 = tpu.matmul %99, %14, %cst_58 {dimension_numbers = #tpu.dot_dimension_numbers<[1], [0], [0], [1], [0, 0, 1, 1], [], []>} : vector<2x32xf32>, vector<32x128xf32>, vector<2x128xf32> -> vector<2x128xf32>
    %102 = arith.index_cast %c3_i32 : i32 to index
    %c0_59 = arith.constant 0 : index
    %c0_60 = arith.constant 0 : index
    %103 = vector.load %arg13[%102, %c0_59, %c0_60] : memref<8x2x128xf32, #tpu.memory_space<vmem>>, vector<1x2x128xf32>
    %104 = vector.shape_cast %103 : vector<1x2x128xf32> to vector<2x128xf32>
    %105 = arith.addf %101, %104 : vector<2x128xf32>
    %106 = arith.negf %105 : vector<2x128xf32>
    %107 = math.exp %106 : vector<2x128xf32>
    %cst_61 = arith.constant 1.000000e+00 : f32
    %108 = vector.broadcast %cst_61 : f32 to vector<2x128xf32>
    %109 = arith.addf %108, %107 : vector<2x128xf32>
    %110 = arith.divf %108, %109 : vector<2x128xf32>
    %111 = math.tanh %105 : vector<2x128xf32>
    %112 = vector.extract_strided_slice %110 {offsets = [0, 0], sizes = [2, 32], strides = [1, 1]} : vector<2x128xf32> to vector<2x32xf32>
    %113 = vector.extract_strided_slice %110 {offsets = [0, 32], sizes = [2, 32], strides = [1, 1]} : vector<2x128xf32> to vector<2x32xf32>
    %114 = vector.extract_strided_slice %111 {offsets = [0, 64], sizes = [2, 32], strides = [1, 1]} : vector<2x128xf32> to vector<2x32xf32>
    %115 = vector.extract_strided_slice %110 {offsets = [0, 96], sizes = [2, 32], strides = [1, 1]} : vector<2x128xf32> to vector<2x32xf32>
    %116 = arith.mulf %113, %100 : vector<2x32xf32>
    %117 = arith.mulf %112, %114 : vector<2x32xf32>
    %118 = arith.addf %116, %117 : vector<2x32xf32>
    %119 = math.tanh %118 : vector<2x32xf32>
    %120 = arith.mulf %115, %119 : vector<2x32xf32>
    %121 = arith.index_cast %c3_i32 : i32 to index
    %c0_62 = arith.constant 0 : index
    %c0_63 = arith.constant 0 : index
    %122 = vector.load %arg14[%121, %c0_62, %c0_63] : memref<8x2x32xf32, #tpu.memory_space<vmem>>, vector<1x2x32xf32>
    %123 = vector.shape_cast %122 : vector<1x2x32xf32> to vector<2x32xf32>
    %124 = vector.shape_cast %120 : vector<2x32xf32> to vector<1x2x32xf32>
    tpu.vector_store %arg14[%121, %c0_62, %c0_63], %124 {strides = array<i32>} : memref<8x2x32xf32, #tpu.memory_space<vmem>>, vector<1x2x32xf32>,
    %c0_64 = arith.constant 0 : index
    %c0_65 = arith.constant 0 : index
    %125 = vector.load %arg11[%c0_64, %c0_65] : memref<2x32xf32, #tpu.memory_space<vmem>>, vector<2x32xf32>
    tpu.vector_store %arg11[%c0_64, %c0_65], %120 {strides = array<i32>} : memref<2x32xf32, #tpu.memory_space<vmem>>, vector<2x32xf32>,
    %c0_66 = arith.constant 0 : index
    %c0_67 = arith.constant 0 : index
    %126 = vector.load %arg12[%c0_66, %c0_67] : memref<2x32xf32, #tpu.memory_space<vmem>>, vector<2x32xf32>
    tpu.vector_store %arg12[%c0_66, %c0_67], %118 {strides = array<i32>} : memref<2x32xf32, #tpu.memory_space<vmem>>, vector<2x32xf32>,
    %c4_i32 = arith.constant 4 : i32
    %c0_68 = arith.constant 0 : index
    %c0_69 = arith.constant 0 : index
    %127 = vector.load %arg11[%c0_68, %c0_69] : memref<2x32xf32, #tpu.memory_space<vmem>>, vector<2x32xf32>
    %c0_70 = arith.constant 0 : index
    %c0_71 = arith.constant 0 : index
    %128 = vector.load %arg12[%c0_70, %c0_71] : memref<2x32xf32, #tpu.memory_space<vmem>>, vector<2x32xf32>
    %cst_72 = arith.constant dense<0.000000e+00> : vector<2x128xf32>
    %129 = tpu.matmul %127, %14, %cst_72 {dimension_numbers = #tpu.dot_dimension_numbers<[1], [0], [0], [1], [0, 0, 1, 1], [], []>} : vector<2x32xf32>, vector<32x128xf32>, vector<2x128xf32> -> vector<2x128xf32>
    %130 = arith.index_cast %c4_i32 : i32 to index
    %c0_73 = arith.constant 0 : index
    %c0_74 = arith.constant 0 : index
    %131 = vector.load %arg13[%130, %c0_73, %c0_74] : memref<8x2x128xf32, #tpu.memory_space<vmem>>, vector<1x2x128xf32>
    %132 = vector.shape_cast %131 : vector<1x2x128xf32> to vector<2x128xf32>
    %133 = arith.addf %129, %132 : vector<2x128xf32>
    %134 = arith.negf %133 : vector<2x128xf32>
    %135 = math.exp %134 : vector<2x128xf32>
    %cst_75 = arith.constant 1.000000e+00 : f32
    %136 = vector.broadcast %cst_75 : f32 to vector<2x128xf32>
    %137 = arith.addf %136, %135 : vector<2x128xf32>
    %138 = arith.divf %136, %137 : vector<2x128xf32>
    %139 = math.tanh %133 : vector<2x128xf32>
    %140 = vector.extract_strided_slice %138 {offsets = [0, 0], sizes = [2, 32], strides = [1, 1]} : vector<2x128xf32> to vector<2x32xf32>
    %141 = vector.extract_strided_slice %138 {offsets = [0, 32], sizes = [2, 32], strides = [1, 1]} : vector<2x128xf32> to vector<2x32xf32>
    %142 = vector.extract_strided_slice %139 {offsets = [0, 64], sizes = [2, 32], strides = [1, 1]} : vector<2x128xf32> to vector<2x32xf32>
    %143 = vector.extract_strided_slice %138 {offsets = [0, 96], sizes = [2, 32], strides = [1, 1]} : vector<2x128xf32> to vector<2x32xf32>
    %144 = arith.mulf %141, %128 : vector<2x32xf32>
    %145 = arith.mulf %140, %142 : vector<2x32xf32>
    %146 = arith.addf %144, %145 : vector<2x32xf32>
    %147 = math.tanh %146 : vector<2x32xf32>
    %148 = arith.mulf %143, %147 : vector<2x32xf32>
    %149 = arith.index_cast %c4_i32 : i32 to index
    %c0_76 = arith.constant 0 : index
    %c0_77 = arith.constant 0 : index
    %150 = vector.load %arg14[%149, %c0_76, %c0_77] : memref<8x2x32xf32, #tpu.memory_space<vmem>>, vector<1x2x32xf32>
    %151 = vector.shape_cast %150 : vector<1x2x32xf32> to vector<2x32xf32>
    %152 = vector.shape_cast %148 : vector<2x32xf32> to vector<1x2x32xf32>
    tpu.vector_store %arg14[%149, %c0_76, %c0_77], %152 {strides = array<i32>} : memref<8x2x32xf32, #tpu.memory_space<vmem>>, vector<1x2x32xf32>,
    %c0_78 = arith.constant 0 : index
    %c0_79 = arith.constant 0 : index
    %153 = vector.load %arg11[%c0_78, %c0_79] : memref<2x32xf32, #tpu.memory_space<vmem>>, vector<2x32xf32>
    tpu.vector_store %arg11[%c0_78, %c0_79], %148 {strides = array<i32>} : memref<2x32xf32, #tpu.memory_space<vmem>>, vector<2x32xf32>,
    %c0_80 = arith.constant 0 : index
    %c0_81 = arith.constant 0 : index
    %154 = vector.load %arg12[%c0_80, %c0_81] : memref<2x32xf32, #tpu.memory_space<vmem>>, vector<2x32xf32>
    tpu.vector_store %arg12[%c0_80, %c0_81], %146 {strides = array<i32>} : memref<2x32xf32, #tpu.memory_space<vmem>>, vector<2x32xf32>,
    %c5_i32 = arith.constant 5 : i32
    %c0_82 = arith.constant 0 : index
    %c0_83 = arith.constant 0 : index
    %155 = vector.load %arg11[%c0_82, %c0_83] : memref<2x32xf32, #tpu.memory_space<vmem>>, vector<2x32xf32>
    %c0_84 = arith.constant 0 : index
    %c0_85 = arith.constant 0 : index
    %156 = vector.load %arg12[%c0_84, %c0_85] : memref<2x32xf32, #tpu.memory_space<vmem>>, vector<2x32xf32>
    %cst_86 = arith.constant dense<0.000000e+00> : vector<2x128xf32>
    %157 = tpu.matmul %155, %14, %cst_86 {dimension_numbers = #tpu.dot_dimension_numbers<[1], [0], [0], [1], [0, 0, 1, 1], [], []>} : vector<2x32xf32>, vector<32x128xf32>, vector<2x128xf32> -> vector<2x128xf32>
    %158 = arith.index_cast %c5_i32 : i32 to index
    %c0_87 = arith.constant 0 : index
    %c0_88 = arith.constant 0 : index
    %159 = vector.load %arg13[%158, %c0_87, %c0_88] : memref<8x2x128xf32, #tpu.memory_space<vmem>>, vector<1x2x128xf32>
    %160 = vector.shape_cast %159 : vector<1x2x128xf32> to vector<2x128xf32>
    %161 = arith.addf %157, %160 : vector<2x128xf32>
    %162 = arith.negf %161 : vector<2x128xf32>
    %163 = math.exp %162 : vector<2x128xf32>
    %cst_89 = arith.constant 1.000000e+00 : f32
    %164 = vector.broadcast %cst_89 : f32 to vector<2x128xf32>
    %165 = arith.addf %164, %163 : vector<2x128xf32>
    %166 = arith.divf %164, %165 : vector<2x128xf32>
    %167 = math.tanh %161 : vector<2x128xf32>
    %168 = vector.extract_strided_slice %166 {offsets = [0, 0], sizes = [2, 32], strides = [1, 1]} : vector<2x128xf32> to vector<2x32xf32>
    %169 = vector.extract_strided_slice %166 {offsets = [0, 32], sizes = [2, 32], strides = [1, 1]} : vector<2x128xf32> to vector<2x32xf32>
    %170 = vector.extract_strided_slice %167 {offsets = [0, 64], sizes = [2, 32], strides = [1, 1]} : vector<2x128xf32> to vector<2x32xf32>
    %171 = vector.extract_strided_slice %166 {offsets = [0, 96], sizes = [2, 32], strides = [1, 1]} : vector<2x128xf32> to vector<2x32xf32>
    %172 = arith.mulf %169, %156 : vector<2x32xf32>
    %173 = arith.mulf %168, %170 : vector<2x32xf32>
    %174 = arith.addf %172, %173 : vector<2x32xf32>
    %175 = math.tanh %174 : vector<2x32xf32>
    %176 = arith.mulf %171, %175 : vector<2x32xf32>
    %177 = arith.index_cast %c5_i32 : i32 to index
    %c0_90 = arith.constant 0 : index
    %c0_91 = arith.constant 0 : index
    %178 = vector.load %arg14[%177, %c0_90, %c0_91] : memref<8x2x32xf32, #tpu.memory_space<vmem>>, vector<1x2x32xf32>
    %179 = vector.shape_cast %178 : vector<1x2x32xf32> to vector<2x32xf32>
    %180 = vector.shape_cast %176 : vector<2x32xf32> to vector<1x2x32xf32>
    tpu.vector_store %arg14[%177, %c0_90, %c0_91], %180 {strides = array<i32>} : memref<8x2x32xf32, #tpu.memory_space<vmem>>, vector<1x2x32xf32>,
    %c0_92 = arith.constant 0 : index
    %c0_93 = arith.constant 0 : index
    %181 = vector.load %arg11[%c0_92, %c0_93] : memref<2x32xf32, #tpu.memory_space<vmem>>, vector<2x32xf32>
    tpu.vector_store %arg11[%c0_92, %c0_93], %176 {strides = array<i32>} : memref<2x32xf32, #tpu.memory_space<vmem>>, vector<2x32xf32>,
    %c0_94 = arith.constant 0 : index
    %c0_95 = arith.constant 0 : index
    %182 = vector.load %arg12[%c0_94, %c0_95] : memref<2x32xf32, #tpu.memory_space<vmem>>, vector<2x32xf32>
    tpu.vector_store %arg12[%c0_94, %c0_95], %174 {strides = array<i32>} : memref<2x32xf32, #tpu.memory_space<vmem>>, vector<2x32xf32>,
    %c6_i32 = arith.constant 6 : i32
    %c0_96 = arith.constant 0 : index
    %c0_97 = arith.constant 0 : index
    %183 = vector.load %arg11[%c0_96, %c0_97] : memref<2x32xf32, #tpu.memory_space<vmem>>, vector<2x32xf32>
    %c0_98 = arith.constant 0 : index
    %c0_99 = arith.constant 0 : index
    %184 = vector.load %arg12[%c0_98, %c0_99] : memref<2x32xf32, #tpu.memory_space<vmem>>, vector<2x32xf32>
    %cst_100 = arith.constant dense<0.000000e+00> : vector<2x128xf32>
    %185 = tpu.matmul %183, %14, %cst_100 {dimension_numbers = #tpu.dot_dimension_numbers<[1], [0], [0], [1], [0, 0, 1, 1], [], []>} : vector<2x32xf32>, vector<32x128xf32>, vector<2x128xf32> -> vector<2x128xf32>
    %186 = arith.index_cast %c6_i32 : i32 to index
    %c0_101 = arith.constant 0 : index
    %c0_102 = arith.constant 0 : index
    %187 = vector.load %arg13[%186, %c0_101, %c0_102] : memref<8x2x128xf32, #tpu.memory_space<vmem>>, vector<1x2x128xf32>
    %188 = vector.shape_cast %187 : vector<1x2x128xf32> to vector<2x128xf32>
    %189 = arith.addf %185, %188 : vector<2x128xf32>
    %190 = arith.negf %189 : vector<2x128xf32>
    %191 = math.exp %190 : vector<2x128xf32>
    %cst_103 = arith.constant 1.000000e+00 : f32
    %192 = vector.broadcast %cst_103 : f32 to vector<2x128xf32>
    %193 = arith.addf %192, %191 : vector<2x128xf32>
    %194 = arith.divf %192, %193 : vector<2x128xf32>
    %195 = math.tanh %189 : vector<2x128xf32>
    %196 = vector.extract_strided_slice %194 {offsets = [0, 0], sizes = [2, 32], strides = [1, 1]} : vector<2x128xf32> to vector<2x32xf32>
    %197 = vector.extract_strided_slice %194 {offsets = [0, 32], sizes = [2, 32], strides = [1, 1]} : vector<2x128xf32> to vector<2x32xf32>
    %198 = vector.extract_strided_slice %195 {offsets = [0, 64], sizes = [2, 32], strides = [1, 1]} : vector<2x128xf32> to vector<2x32xf32>
    %199 = vector.extract_strided_slice %194 {offsets = [0, 96], sizes = [2, 32], strides = [1, 1]} : vector<2x128xf32> to vector<2x32xf32>
    %200 = arith.mulf %197, %184 : vector<2x32xf32>
    %201 = arith.mulf %196, %198 : vector<2x32xf32>
    %202 = arith.addf %200, %201 : vector<2x32xf32>
    %203 = math.tanh %202 : vector<2x32xf32>
    %204 = arith.mulf %199, %203 : vector<2x32xf32>
    %205 = arith.index_cast %c6_i32 : i32 to index
    %c0_104 = arith.constant 0 : index
    %c0_105 = arith.constant 0 : index
    %206 = vector.load %arg14[%205, %c0_104, %c0_105] : memref<8x2x32xf32, #tpu.memory_space<vmem>>, vector<1x2x32xf32>
    %207 = vector.shape_cast %206 : vector<1x2x32xf32> to vector<2x32xf32>
    %208 = vector.shape_cast %204 : vector<2x32xf32> to vector<1x2x32xf32>
    tpu.vector_store %arg14[%205, %c0_104, %c0_105], %208 {strides = array<i32>} : memref<8x2x32xf32, #tpu.memory_space<vmem>>, vector<1x2x32xf32>,
    %c0_106 = arith.constant 0 : index
    %c0_107 = arith.constant 0 : index
    %209 = vector.load %arg11[%c0_106, %c0_107] : memref<2x32xf32, #tpu.memory_space<vmem>>, vector<2x32xf32>
    tpu.vector_store %arg11[%c0_106, %c0_107], %204 {strides = array<i32>} : memref<2x32xf32, #tpu.memory_space<vmem>>, vector<2x32xf32>,
    %c0_108 = arith.constant 0 : index
    %c0_109 = arith.constant 0 : index
    %210 = vector.load %arg12[%c0_108, %c0_109] : memref<2x32xf32, #tpu.memory_space<vmem>>, vector<2x32xf32>
    tpu.vector_store %arg12[%c0_108, %c0_109], %202 {strides = array<i32>} : memref<2x32xf32, #tpu.memory_space<vmem>>, vector<2x32xf32>,
    %c7_i32 = arith.constant 7 : i32
    %c0_110 = arith.constant 0 : index
    %c0_111 = arith.constant 0 : index
    %211 = vector.load %arg11[%c0_110, %c0_111] : memref<2x32xf32, #tpu.memory_space<vmem>>, vector<2x32xf32>
    %c0_112 = arith.constant 0 : index
    %c0_113 = arith.constant 0 : index
    %212 = vector.load %arg12[%c0_112, %c0_113] : memref<2x32xf32, #tpu.memory_space<vmem>>, vector<2x32xf32>
    %cst_114 = arith.constant dense<0.000000e+00> : vector<2x128xf32>
    %213 = tpu.matmul %211, %14, %cst_114 {dimension_numbers = #tpu.dot_dimension_numbers<[1], [0], [0], [1], [0, 0, 1, 1], [], []>} : vector<2x32xf32>, vector<32x128xf32>, vector<2x128xf32> -> vector<2x128xf32>
    %214 = arith.index_cast %c7_i32 : i32 to index
    %c0_115 = arith.constant 0 : index
    %c0_116 = arith.constant 0 : index
    %215 = vector.load %arg13[%214, %c0_115, %c0_116] : memref<8x2x128xf32, #tpu.memory_space<vmem>>, vector<1x2x128xf32>
    %216 = vector.shape_cast %215 : vector<1x2x128xf32> to vector<2x128xf32>
    %217 = arith.addf %213, %216 : vector<2x128xf32>
    %218 = arith.negf %217 : vector<2x128xf32>
    %219 = math.exp %218 : vector<2x128xf32>
    %cst_117 = arith.constant 1.000000e+00 : f32
    %220 = vector.broadcast %cst_117 : f32 to vector<2x128xf32>
    %221 = arith.addf %220, %219 : vector<2x128xf32>
    %222 = arith.divf %220, %221 : vector<2x128xf32>
    %223 = math.tanh %217 : vector<2x128xf32>
    %224 = vector.extract_strided_slice %222 {offsets = [0, 0], sizes = [2, 32], strides = [1, 1]} : vector<2x128xf32> to vector<2x32xf32>
    %225 = vector.extract_strided_slice %222 {offsets = [0, 32], sizes = [2, 32], strides = [1, 1]} : vector<2x128xf32> to vector<2x32xf32>
    %226 = vector.extract_strided_slice %223 {offsets = [0, 64], sizes = [2, 32], strides = [1, 1]} : vector<2x128xf32> to vector<2x32xf32>
    %227 = vector.extract_strided_slice %222 {offsets = [0, 96], sizes = [2, 32], strides = [1, 1]} : vector<2x128xf32> to vector<2x32xf32>
    %228 = arith.mulf %225, %212 : vector<2x32xf32>
    %229 = arith.mulf %224, %226 : vector<2x32xf32>
    %230 = arith.addf %228, %229 : vector<2x32xf32>
    %231 = math.tanh %230 : vector<2x32xf32>
    %232 = arith.mulf %227, %231 : vector<2x32xf32>
    %233 = arith.index_cast %c7_i32 : i32 to index
    %c0_118 = arith.constant 0 : index
    %c0_119 = arith.constant 0 : index
    %234 = vector.load %arg14[%233, %c0_118, %c0_119] : memref<8x2x32xf32, #tpu.memory_space<vmem>>, vector<1x2x32xf32>
    %235 = vector.shape_cast %234 : vector<1x2x32xf32> to vector<2x32xf32>
    %236 = vector.shape_cast %232 : vector<2x32xf32> to vector<1x2x32xf32>
    tpu.vector_store %arg14[%233, %c0_118, %c0_119], %236 {strides = array<i32>} : memref<8x2x32xf32, #tpu.memory_space<vmem>>, vector<1x2x32xf32>,
    %c0_120 = arith.constant 0 : index
    %c0_121 = arith.constant 0 : index
    %237 = vector.load %arg11[%c0_120, %c0_121] : memref<2x32xf32, #tpu.memory_space<vmem>>, vector<2x32xf32>
    tpu.vector_store %arg11[%c0_120, %c0_121], %232 {strides = array<i32>} : memref<2x32xf32, #tpu.memory_space<vmem>>, vector<2x32xf32>,
    %c0_122 = arith.constant 0 : index
    %c0_123 = arith.constant 0 : index
    %238 = vector.load %arg12[%c0_122, %c0_123] : memref<2x32xf32, #tpu.memory_space<vmem>>, vector<2x32xf32>
    tpu.vector_store %arg12[%c0_122, %c0_123], %230 {strides = array<i32>} : memref<2x32xf32, #tpu.memory_space<vmem>>, vector<2x32xf32>,
    %c8_i32 = arith.constant 8 : i32
    %c0_124 = arith.constant 0 : index
    %c0_125 = arith.constant 0 : index
    %c0_126 = arith.constant 0 : index
    %239 = vector.load %arg14[%c0_124, %c0_125, %c0_126] : memref<8x2x32xf32, #tpu.memory_space<vmem>>, vector<8x2x32xf32>
    %c0_127 = arith.constant 0 : index
    %c0_128 = arith.constant 0 : index
    %240 = vector.load %arg6[%c0_127, %c0_128] : memref<1x32xf32, #tpu.memory_space<vmem>>, vector<1x32xf32>
    %241 = vector.shape_cast %240 : vector<1x32xf32> to vector<1x1x32xf32>
    %242 = vector.broadcast %241 : vector<1x1x32xf32> to vector<8x2x32xf32>
    %243 = arith.mulf %239, %242 : vector<8x2x32xf32>
    %cst_129 = arith.constant dense<0.000000e+00> : vector<8x2xf32>
    %244 = vector.multi_reduction <add>, %243, %cst_129 [2] : vector<8x2x32xf32> to vector<8x2xf32>
    %c0_130 = arith.constant 0 : index
    %c0_131 = arith.constant 0 : index
    %245 = vector.load %arg7[%c0_130, %c0_131] : memref<1x1xf32, #tpu.memory_space<vmem>>, vector<1x1xf32>
    %246 = vector.broadcast %245 : vector<1x1xf32> to vector<8x2xf32>
    %247 = arith.addf %244, %246 : vector<8x2xf32>
    %248 = math.tanh %247 : vector<8x2xf32>
    %c0_132 = arith.constant 0 : index
    %c0_133 = arith.constant 0 : index
    %249 = vector.load %arg10[%c0_132, %c0_133] : memref<8x2xf32, #tpu.memory_space<vmem>>, vector<8x2xf32>
    tpu.vector_store %arg10[%c0_132, %c0_133], %248 {strides = array<i32>} : memref<8x2xf32, #tpu.memory_space<vmem>>, vector<8x2xf32>,
    return
  }
  func.func @transform_0(%arg0: i32, %arg1: memref<1xi32, #tpu.memory_space<smem>>) -> (i32, i32, i32) {
    %c0_i32 = arith.constant 0 : i32
    %c0_i32_0 = arith.constant 0 : i32
    %c0_i32_1 = arith.constant 0 : i32
    return %arg0, %c0_i32, %c0_i32_0 : i32, i32, i32
  }
  func.func @transform_1(%arg0: i32, %arg1: memref<1xi32, #tpu.memory_space<smem>>) -> (i32, i32) {
    %c0_i32 = arith.constant 0 : i32
    %c0_i32_0 = arith.constant 0 : i32
    %c0_i32_1 = arith.constant 0 : i32
    return %c0_i32, %c0_i32_0 : i32, i32
  }
  func.func @transform_2(%arg0: i32, %arg1: memref<1xi32, #tpu.memory_space<smem>>) -> (i32, i32) {
    %c0_i32 = arith.constant 0 : i32
    %c0_i32_0 = arith.constant 0 : i32
    %c0_i32_1 = arith.constant 0 : i32
    return %c0_i32, %c0_i32_0 : i32, i32
  }
  func.func @transform_3(%arg0: i32, %arg1: memref<1xi32, #tpu.memory_space<smem>>) -> (i32, i32) {
    %c0_i32 = arith.constant 0 : i32
    %c0_i32_0 = arith.constant 0 : i32
    %c0_i32_1 = arith.constant 0 : i32
    return %c0_i32, %c0_i32_0 : i32, i32
  }
  func.func @transform_4(%arg0: i32, %arg1: memref<1xi32, #tpu.memory_space<smem>>) -> (i32, i32) {
    %c0_i32 = arith.constant 0 : i32
    %c0_i32_0 = arith.constant 0 : i32
    %c0_i32_1 = arith.constant 0 : i32
    return %c0_i32, %c0_i32_0 : i32, i32
  }
  func.func @transform_5(%arg0: i32, %arg1: memref<1xi32, #tpu.memory_space<smem>>) -> (i32, i32) {
    %c0_i32 = arith.constant 0 : i32
    %c0_i32_0 = arith.constant 0 : i32
    %c0_i32_1 = arith.constant 0 : i32
    return %c0_i32, %c0_i32_0 : i32, i32
  }
  func.func @transform_6(%arg0: i32, %arg1: memref<1xi32, #tpu.memory_space<smem>>) -> (i32, i32) {
    %c0_i32 = arith.constant 0 : i32
    %c0_i32_0 = arith.constant 0 : i32
    %c0_i32_1 = arith.constant 0 : i32
    return %c0_i32, %c0_i32_0 : i32, i32
  }
  func.func @transform_7(%arg0: i32, %arg1: memref<1xi32, #tpu.memory_space<smem>>) -> (i32, i32) {
    %c0_i32 = arith.constant 0 : i32
    %c0_i32_0 = arith.constant 0 : i32
    %c0_i32_1 = arith.constant 0 : i32
    return %c0_i32, %c0_i32_0 : i32, i32
  }
  func.func @transform_8(%arg0: i32, %arg1: memref<1xi32, #tpu.memory_space<smem>>) -> (i32, i32) {
    %c0_i32 = arith.constant 0 : i32
    %c0_i32_0 = arith.constant 0 : i32
    return %arg0, %c0_i32 : i32, i32
  }
  func.func @transform_9(%arg0: i32, %arg1: memref<1xi32, #tpu.memory_space<smem>>) -> (i32, i32) {
    %c0_i32 = arith.constant 0 : i32
    %c0_i32_0 = arith.constant 0 : i32
    %c0_i32_1 = arith.constant 0 : i32
    return %c0_i32, %c0_i32_0 : i32, i32
  }
  func.func @transform_10(%arg0: i32, %arg1: memref<1xi32, #tpu.memory_space<smem>>) -> (i32, i32) {
    %c0_i32 = arith.constant 0 : i32
    %c0_i32_0 = arith.constant 0 : i32
    %c0_i32_1 = arith.constant 0 : i32
    return %c0_i32, %c0_i32_0 : i32, i32
  }
}

</mosaic_0001>

<llo_original>
// kernel: lstm_forward.1
$region0: #{lstm_forward.1}
  #allocation0 [shape = 'u32[]', space=smem, size = 0x4, offset = 0x4, fixed_abs, tag = 'smem constant byte address 0x4 - core index']
  #allocation1 [shape = 'u32[144,128]{1,0:T(1,128)}', space=vmem, size = 0x12000, scoped, tag = 'internal scratch']
  #allocation2 [shape = 'f32[8,2,128]{2,1,0:T(2,128)}', space=vmem, size = 0x2000, scoped, tag = 'scratch operand']
  #allocation3 [shape = 'f32[8,2,32]{2,1,0:T(2,128)}', space=vmem, size = 0x2000, scoped, tag = 'scratch operand']
  #allocation4 [shape = 's32[1]{0}', space=sflag, size = 0x4, scoped, tag = 'scoped memory for lstm_forward.1']
  #allocation5 [shape = 's32[1]{0:T(128)S(6)}', space=smem, size = 0x200, scoped, tag = 'prefetched SMEM operand 0']
  #allocation6 [shape = 'f32[1,1]{1,0:T(1,128)S(1)}', space=vmem, size = 0x200, scoped, tag = 'scoped memory for lstm_forward.1']
  %s0 = inlined_call_operand.<no memory space> [shape: s32[1], index: 0, kind: input, shape index: {}]
  %s1 = inlined_call_operand.vmem [shape: f32[8,2,1], index: 1, kind: input, shape index: {}]
  %s2 = inlined_call_operand.vmem [shape: f32[1,128], index: 2, kind: input, shape index: {}]
  %s3 = inlined_call_operand.vmem [shape: f32[32,128], index: 3, kind: input, shape index: {}]
  %s4 = inlined_call_operand.vmem [shape: f32[1,128], index: 4, kind: input, shape index: {}]
  %s5 = inlined_call_operand.vmem [shape: f32[1,32], index: 5, kind: input, shape index: {}]
  %s6 = inlined_call_operand.<no memory space> [shape: f32[1,1], index: 6, kind: input, shape index: {}]
  %s7 = inlined_call_operand.vmem [shape: f32[2,32], index: 7, kind: input, shape index: {}, may-alias: {7,8}]
  %s8 = inlined_call_operand.vmem [shape: f32[2,32], index: 8, kind: input, shape index: {}, may-alias: {7,8}]
  %s9 = inlined_call_operand.vmem [shape: f32[8,2], index: 9, kind: output, shape index: {0}]
  %s10 = inlined_call_operand.hbm [shape: f32[2,32], index: 10, kind: output, shape index: {1}]
  %s11 = inlined_call_operand.hbm [shape: f32[2,32], index: 11, kind: output, shape index: {2}]
  %12 = xla_tuple %s9, %s10, %s11
  %s13 = sld [smem:[#allocation0]]
  $region62: #{lstm_forward.1} parent=0
    _
  %s15 = ssub.s32 1, %s13
  %s16 = scalar_select 0, %s15, %s13
  %17 = sst [smem:[#allocation5]] %s0
  %v18 = vstv %s6
  %19 = vst [vmem:[#allocation6] sm:$0x1] %v18
  $region1: #{lstm_forward.1} parent=0
    #allocation7 [shape = 'u8[1024]{0}', space=vmem, size = 0x400, scoped, tag = 'output window, operand 1, single buffered']
    #allocation8 [shape = 's32[1]{0}', space=sflag, size = 0x4, scoped, tag = 'scoped memory for lstm_forward.1']
    #allocation9 [shape = 'u8[1024]{0}', space=vmem, size = 0x400, scoped, tag = 'output window, operand 2, single buffered']
    #allocation10 [shape = 's32[1]{0}', space=sflag, size = 0x4, scoped, tag = 'scoped memory for lstm_forward.1']
    %20 = vsyncpa [#allocation8], 0
    %21 = vsyncpa [#allocation10], 0
    // Predicated region
    $region2: #{lstm_forward.1} parent=1 // pred_check
      _
    $region3: #{lstm_forward.1} parent=1 // pred_check_branch
      %23 = sbr.rel (0) target = $region5
    $region4: #{lstm_forward.1} parent=1 // pred_region
      _
    $region5: #{lstm_forward.1} parent=1 // pred_fallthru
      _
    // Predicated region
    $region6: #{lstm_forward.1} parent=1 // pred_check
      _
    $region7: #{lstm_forward.1} parent=1 // pred_check_branch
      %25 = sbr.rel (0) target = $region9
    $region8: #{lstm_forward.1} parent=1 // pred_region
      _
    $region9: #{lstm_forward.1} parent=1 // pred_fallthru
      _
    // Predicated region
    $region10: #{lstm_forward.1} parent=1 // pred_check
      _
    $region11: #{lstm_forward.1} parent=1 // pred_check_branch
      %27 = sbr.rel (0) target = $region13
    $region12: #{lstm_forward.1} parent=1 // pred_region
      _
    $region13: #{lstm_forward.1} parent=1 // pred_fallthru
      _
    // Predicated region
    $region14: #{lstm_forward.1} parent=1 // pred_check
      _
    $region15: #{lstm_forward.1} parent=1 // pred_check_branch
      %29 = sbr.rel (0) target = $region17
    $region16: #{lstm_forward.1} parent=1 // pred_region
      _
    $region17: #{lstm_forward.1} parent=1 // pred_fallthru
      _
    // Predicated region
    $region18: #{lstm_forward.1} parent=1 // pred_check
      _
    $region19: #{lstm_forward.1} parent=1 // pred_check_branch
      %31 = sbr.rel (0) target = $region21
    $region20: #{lstm_forward.1} parent=1 // pred_region
      _
    $region21: #{lstm_forward.1} parent=1 // pred_fallthru
      _
    // Predicated region
    $region22: #{lstm_forward.1} parent=1 // pred_check
      _
    $region23: #{lstm_forward.1} parent=1 // pred_check_branch
      %33 = sbr.rel (0) target = $region25
    $region24: #{lstm_forward.1} parent=1 // pred_region
      _
    $region25: #{lstm_forward.1} parent=1 // pred_fallthru
      _
    // Predicated region
    $region26: #{lstm_forward.1} parent=1 // pred_check
      _
    $region27: #{lstm_forward.1} parent=1 // pred_check_branch
      %35 = sbr.rel (0) target = $region29
    $region28: #{lstm_forward.1} parent=1 // pred_region
      _
    $region29: #{lstm_forward.1} parent=1 // pred_fallthru
      _
    // Predicated region
    $region30: #{lstm_forward.1} parent=1 // pred_check
      _
    $region31: #{lstm_forward.1} parent=1 // pred_check_branch
      %37 = sbr.rel (0) target = $region33
    $region32: #{lstm_forward.1} parent=1 // pred_region
      _
    $region33: #{lstm_forward.1} parent=1 // pred_fallthru
      _
    %p38 = scmp.eq.s32.totalorder 0, 0
    // Predicated region
    $region34: #{lstm_forward.1} parent=1 // pred_check
      %p39 = pneg %p38
    $region35: #{lstm_forward.1} parent=1 // pred_check_branch
      %41 = sbr.rel (%p39) target = $region37
    $region36: #{lstm_forward.1} parent=1 // pred_region
      %v42 = vld [vmem:[%s7] sm:$0x3]
      %vm43 = vcmask 254976
      %44 = vst.msk [vmem:[#allocation7] sm:$0x3] %vm43, %v42
      %v45 = vld [vmem:[%s8] sm:$0x3]
      %46 = vst.msk [vmem:[#allocation9] sm:$0x3] %vm43, %v45
    $region37: #{lstm_forward.1} parent=1 // pred_fallthru
      _
    %v47 = vld [vmem:[%s1] sm:$0x3]
    %v48 = vld [vmem:[%s1 + $0x2] sm:$0x3]
    %v49 = vld [vmem:[%s1 + $0x4] sm:$0x3]
    %v50 = vld [vmem:[%s1 + $0x6] sm:$0x3]
    %v51 = vld [vmem:[%s1 + $0x8] sm:$0x3]
    %v52 = vld [vmem:[%s1 + $0xa] sm:$0x3]
    %v53 = vld [vmem:[%s1 + $0xc] sm:$0x3]
    %v54 = vld [vmem:[%s1 + $0xe] sm:$0x3]
    %v55 = vld [vmem:[%s2] sm:$0x1]
    %57 = vset.pattern.permute.xlu0 0
    %58 = vperm.xlu0 %57, %v47
    %v59 = vpop.permute.xlu0 %58
    %62 = vset.pattern.permute.xlu0 0
    %63 = vperm.xlu0 %62, %v48
    %v64 = vpop.permute.xlu0 %63
    %67 = vset.pattern.permute.xlu0 0
    %68 = vperm.xlu0 %67, %v49
    %v69 = vpop.permute.xlu0 %68
    %72 = vset.pattern.permute.xlu0 0
    %73 = vperm.xlu0 %72, %v50
    %v74 = vpop.permute.xlu0 %73
    %77 = vset.pattern.permute.xlu0 0
    %78 = vperm.xlu0 %77, %v51
    %v79 = vpop.permute.xlu0 %78
    %82 = vset.pattern.permute.xlu0 0
    %83 = vperm.xlu0 %82, %v52
    %v84 = vpop.permute.xlu0 %83
    %87 = vset.pattern.permute.xlu0 0
    %88 = vperm.xlu0 %87, %v53
    %v89 = vpop.permute.xlu0 %88
    %92 = vset.pattern.permute.xlu0 0
    %93 = vperm.xlu0 %92, %v54
    %v94 = vpop.permute.xlu0 %93
    %v97 = vlaneseq
    %v98 = vshrl.u32 %v97, 7
    %v99 = vsub.s32 0, %v98
    %v100 = vrot.slane %v55, %v99
    %v102 = vmul.f32 %v59, %v100
    %v103 = vmul.f32 %v64, %v100
    %v104 = vmul.f32 %v69, %v100
    %v105 = vmul.f32 %v74, %v100
    %v106 = vmul.f32 %v79, %v100
    %v107 = vmul.f32 %v84, %v100
    %v108 = vmul.f32 %v89, %v100
    %v109 = vmul.f32 %v94, %v100
    %v110 = vld [vmem:[%s4] sm:$0x1]
    %v112 = vlaneseq
    %v113 = vshrl.u32 %v112, 7
    %v114 = vsub.s32 0, %v113
    %v115 = vrot.slane %v110, %v114
    %v117 = vadd.f32 %v102, %v115
    %v118 = vadd.f32 %v103, %v115
    %v119 = vadd.f32 %v104, %v115
    %v120 = vadd.f32 %v105, %v115
    %v121 = vadd.f32 %v106, %v115
    %v122 = vadd.f32 %v107, %v115
    %v123 = vadd.f32 %v108, %v115
    %v124 = vadd.f32 %v109, %v115
    %125 = vst [vmem:[#allocation2] sm:$0x3] %v117
    %126 = vst [vmem:[#allocation2 + $0x2] sm:$0x3] %v118
    %127 = vst [vmem:[#allocation2 + $0x4] sm:$0x3] %v119
    %128 = vst [vmem:[#allocation2 + $0x6] sm:$0x3] %v120
    %129 = vst [vmem:[#allocation2 + $0x8] sm:$0x3] %v121
    %130 = vst [vmem:[#allocation2 + $0xa] sm:$0x3] %v122
    %131 = vst [vmem:[#allocation2 + $0xc] sm:$0x3] %v123
    %132 = vst [vmem:[#allocation2 + $0xe] sm:$0x3] %v124
    %v133 = vld [vmem:[%s3] sm:$0xff]
    %v134 = vld [vmem:[%s3 + $0x8] sm:$0xff]
    %v135 = vld [vmem:[%s3 + $0x10] sm:$0xff]
    %v136 = vld [vmem:[%s3 + $0x18] sm:$0xff]
    %v137 = vld [vmem:[#allocation7] sm:$0x3]
    %v138 = vld [vmem:[#allocation9] sm:$0x3]
    %v139 = vld [vmem:[#allocation2] sm:$0x3]
    %vm140 = vcmask 261120
    %v142 = vsel %vm140, %v137, 0
    %144 = vmatprep.subr.mxu0 0.0
    %145 = vmatpush1.msra.mxu0 %v133
    %146 = vmatprep.subr.mxu0 0.0
    %147 = vmatpush1.msra.mxu0 %v134
    %148 = vmatprep.subr.mxu0 0.0
    %149 = vmatpush1.msra.mxu0 %v135
    %150 = vmatprep.subr.mxu0 0.0
    %151 = vmatpush1.msra.mxu0 %v136
    %152 = vmatprep.subr.mxu0 0.0
    %153 = vmatpush1.msra.mxu0 0.0
    %154 = vmatprep.subr.mxu0 0.0
    %155 = vmatpush1.msra.mxu0 0.0
    %156 = vmatprep.subr.mxu0 0.0
    %157 = vmatpush1.msra.mxu0 0.0
    %158 = vmatprep.subr.mxu0 0.0
    %159 = vmatpush1.msra.mxu0 0.0
    %160 = vmatprep.subr.mxu0 0.0
    %161 = vmatpush1.msra.mxu0 0.0
    %162 = vmatprep.subr.mxu0 0.0
    %163 = vmatpush1.msra.mxu0 0.0
    %164 = vmatprep.subr.mxu0 0.0
    %165 = vmatpush1.msra.mxu0 0.0
    %166 = vmatprep.subr.mxu0 0.0
    %167 = vmatpush1.msra.mxu0 0.0
    %168 = vmatprep.subr.mxu0 0.0
    %169 = vmatpush1.msra.mxu0 0.0
    %170 = vmatprep.subr.mxu0 0.0
    %171 = vmatpush1.msra.mxu0 0.0
    %172 = vmatprep.subr.mxu0 0.0
    %173 = vmatpush1.msra.mxu0 0.0
    %174 = vmatprep.subr.mxu0 0.0
    %175 = vmatpush1.msra.mxu0 0.0
    %176 = vmatprep.subr.mxu0 0.0
    %177 = vmatpush1.msra.mxu0 0.0
    %178 = vmatprep.subr.mxu0 0.0
    %179 = vmatpush1.msra.mxu0 0.0
    %180 = vmatprep.subr.mxu0 0.0
    %181 = vmatpush1.msra.mxu0 0.0
    %182 = vmatprep.subr.mxu0 0.0
    %183 = vmatpush1.msra.mxu0 0.0
    %184 = vmatprep.subr.mxu0 0.0
    %185 = vmatpush1.msra.mxu0 0.0
    %186 = vmatprep.subr.mxu0 0.0
    %187 = vmatpush1.msra.mxu0 0.0
    %188 = vmatprep.subr.mxu0 0.0
    %189 = vmatpush1.msra.mxu0 0.0
    %190 = vmatprep.subr.mxu0 0.0
    %191 = vmatpush1.msra.mxu0 0.0
    %192 = vmatprep.subr.mxu0 0.0
    %193 = vmatpush1.msra.mxu0 0.0
    %194 = vmatprep.subr.mxu0 0.0
    %195 = vmatpush1.msra.mxu0 0.0
    %196 = vmatprep.subr.mxu0 0.0
    %197 = vmatpush1.msra.mxu0 0.0
    %198 = vmatprep.subr.mxu0 0.0
    %199 = vmatpush1.msra.mxu0 0.0
    %200 = vmatprep.subr.mxu0 0.0
    %201 = vmatpush1.msra.mxu0 0.0
    %202 = vmatprep.subr.mxu0 0.0
    %203 = vmatpush1.msra.mxu0 0.0
    %204 = vmatprep.subr.mxu0 0.0
    %205 = vmatpush1.msra.mxu0 0.0
    %206 = vmatprep.subr.mxu0 0.0
    %207 = vmatpush1.msra.mxu0 0.0
    %208 = vmatprep.mubr.f32.mxu0 0.0
    %209 = vmatmul.mubr.f32.gmra.mrb[0].mxu0 %v142
    %v210 = vpop.f32.mrb[0].mxu0
    %v211 = vadd.f32 %v139, %v210
    %v212 = vpop.f32.mrb[0].mxu0
    %213 = vdwg.mxu0
    %v214 = vxor.u32 %v211, 2147483648
    %v215 = vmul.f32 %v214, 1.442695
    %v216 = vpow.pop %v215
    %v217 = vadd.f32 %v216, 1.0
    %v218 = vrcp.pop %v217
    %v219 = vmul.f32 1.0, %v218
    %v220 = vtanh.pop %v211
    %222 = vrot.lane.b32.xlu0 %v138, 32
    %v223 = vpop.permute.xlu0 %222
    %v225 = vmul.f32 %v219, %v223
    %227 = vrot.lane.b32.xlu0 %v220, 64
    %v228 = vpop.permute.xlu0 %227
    %v230 = vmul.f32 %v219, %v228
    %232 = vrot.lane.b32.xlu0 %v230, 32
    %v233 = vpop.permute.xlu0 %232
    %v235 = vadd.f32 %v225, %v233
    %v236 = vtanh.pop %v235
    %238 = vrot.lane.b32.xlu0 %v236, 64
    %v239 = vpop.permute.xlu0 %238
    %v241 = vmul.f32 %v219, %v239
    %243 = vrot.lane.b32.xlu0 %v241, 32
    %v244 = vpop.permute.xlu0 %243
    %vm246 = vcmask 254976
    %247 = vst.msk [vmem:[#allocation3] sm:$0x3] %vm246, %v244
    %248 = vst.msk [vmem:[#allocation7] sm:$0x3] %vm246, %v244
    %250 = vrot.lane.b32.xlu0 %v235, 96
    %v251 = vpop.permute.xlu0 %250
    %253 = vst.msk [vmem:[#allocation9] sm:$0x3] %vm246, %v251
    %v254 = vld [vmem:[#allocation7] sm:$0x3]
    %v255 = vld [vmem:[#allocation9] sm:$0x3]
    %s256 = scalar_lea.vmem [#allocation2], 2
    %v257 = vld [vmem:[%s256] sm:$0x3]
    %v259 = vsel %vm140, %v254, 0
    %261 = vmatprep.subr.mxu0 0.0
    %262 = vmatpush1.msra.mxu0 %v133
    %263 = vmatprep.subr.mxu0 0.0
    %264 = vmatpush1.msra.mxu0 %v134
    %265 = vmatprep.subr.mxu0 0.0
    %266 = vmatpush1.msra.mxu0 %v135
    %267 = vmatprep.subr.mxu0 0.0
    %268 = vmatpush1.msra.mxu0 %v136
    %269 = vmatprep.subr.mxu0 0.0
    %270 = vmatpush1.msra.mxu0 0.0
    %271 = vmatprep.subr.mxu0 0.0
    %272 = vmatpush1.msra.mxu0 0.0
    %273 = vmatprep.subr.mxu0 0.0
    %274 = vmatpush1.msra.mxu0 0.0
    %275 = vmatprep.subr.mxu0 0.0
    %276 = vmatpush1.msra.mxu0 0.0
    %277 = vmatprep.subr.mxu0 0.0
    %278 = vmatpush1.msra.mxu0 0.0
    %279 = vmatprep.subr.mxu0 0.0
    %280 = vmatpush1.msra.mxu0 0.0
    %281 = vmatprep.subr.mxu0 0.0
    %282 = vmatpush1.msra.mxu0 0.0
    %283 = vmatprep.subr.mxu0 0.0
    %284 = vmatpush1.msra.mxu0 0.0
    %285 = vmatprep.subr.mxu0 0.0
    %286 = vmatpush1.msra.mxu0 0.0
    %287 = vmatprep.subr.mxu0 0.0
    %288 = vmatpush1.msra.mxu0 0.0
    %289 = vmatprep.subr.mxu0 0.0
    %290 = vmatpush1.msra.mxu0 0.0
    %291 = vmatprep.subr.mxu0 0.0
    %292 = vmatpush1.msra.mxu0 0.0
    %293 = vmatprep.subr.mxu0 0.0
    %294 = vmatpush1.msra.mxu0 0.0
    %295 = vmatprep.subr.mxu0 0.0
    %296 = vmatpush1.msra.mxu0 0.0
    %297 = vmatprep.subr.mxu0 0.0
    %298 = vmatpush1.msra.mxu0 0.0
    %299 = vmatprep.subr.mxu0 0.0
    %300 = vmatpush1.msra.mxu0 0.0
    %301 = vmatprep.subr.mxu0 0.0
    %302 = vmatpush1.msra.mxu0 0.0
    %303 = vmatprep.subr.mxu0 0.0
    %304 = vmatpush1.msra.mxu0 0.0
    %305 = vmatprep.subr.mxu0 0.0
    %306 = vmatpush1.msra.mxu0 0.0
    %307 = vmatprep.subr.mxu0 0.0
    %308 = vmatpush1.msra.mxu0 0.0
    %309 = vmatprep.subr.mxu0 0.0
    %310 = vmatpush1.msra.mxu0 0.0
    %311 = vmatprep.subr.mxu0 0.0
    %312 = vmatpush1.msra.mxu0 0.0
    %313 = vmatprep.subr.mxu0 0.0
    %314 = vmatpush1.msra.mxu0 0.0
    %315 = vmatprep.subr.mxu0 0.0
    %316 = vmatpush1.msra.mxu0 0.0
    %317 = vmatprep.subr.mxu0 0.0
    %318 = vmatpush1.msra.mxu0 0.0
    %319 = vmatprep.subr.mxu0 0.0
    %320 = vmatpush1.msra.mxu0 0.0
    %321 = vmatprep.subr.mxu0 0.0
    %322 = vmatpush1.msra.mxu0 0.0
    %323 = vmatprep.subr.mxu0 0.0
    %324 = vmatpush1.msra.mxu0 0.0
    %325 = vmatprep.mubr.f32.mxu0 0.0
    %326 = vmatmul.mubr.f32.gmra.mrb[0].mxu0 %v259
    %v327 = vpop.f32.mrb[0].mxu0
    %v328 = vadd.f32 %v257, %v327
    %v329 = vpop.f32.mrb[0].mxu0
    %330 = vdwg.mxu0
    %v331 = vxor.u32 %v328, 2147483648
    %v332 = vmul.f32 %v331, 1.442695
    %v333 = vpow.pop %v332
    %v334 = vadd.f32 %v333, 1.0
    %v335 = vrcp.pop %v334
    %v336 = vmul.f32 1.0, %v335
    %v337 = vtanh.pop %v328
    %339 = vrot.lane.b32.xlu0 %v255, 32
    %v340 = vpop.permute.xlu0 %339
    %v342 = vmul.f32 %v336, %v340
    %344 = vrot.lane.b32.xlu0 %v337, 64
    %v345 = vpop.permute.xlu0 %344
    %v347 = vmul.f32 %v336, %v345
    %349 = vrot.lane.b32.xlu0 %v347, 32
    %v350 = vpop.permute.xlu0 %349
    %v352 = vadd.f32 %v342, %v350
    %v353 = vtanh.pop %v352
    %355 = vrot.lane.b32.xlu0 %v353, 64
    %v356 = vpop.permute.xlu0 %355
    %v358 = vmul.f32 %v336, %v356
    %360 = vrot.lane.b32.xlu0 %v358, 32
    %v361 = vpop.permute.xlu0 %360
    %s363 = scalar_lea.vmem [#allocation3], 2
    %364 = vst.msk [vmem:[%s363] sm:$0x3] %vm246, %v361
    %365 = vst.msk [vmem:[#allocation7] sm:$0x3] %vm246, %v361
    %367 = vrot.lane.b32.xlu0 %v352, 96
    %v368 = vpop.permute.xlu0 %367
    %370 = vst.msk [vmem:[#allocation9] sm:$0x3] %vm246, %v368
    %v371 = vld [vmem:[#allocation7] sm:$0x3]
    %v372 = vld [vmem:[#allocation9] sm:$0x3]
    %s373 = scalar_lea.vmem [#allocation2], 4
    %v374 = vld [vmem:[%s373] sm:$0x3]
    %v376 = vsel %vm140, %v371, 0
    %378 = vmatprep.subr.mxu0 0.0
    %379 = vmatpush1.msra.mxu0 %v133
    %380 = vmatprep.subr.mxu0 0.0
    %381 = vmatpush1.msra.mxu0 %v134
    %382 = vmatprep.subr.mxu0 0.0
    %383 = vmatpush1.msra.mxu0 %v135
    %384 = vmatprep.subr.mxu0 0.0
    %385 = vmatpush1.msra.mxu0 %v136
    %386 = vmatprep.subr.mxu0 0.0
    %387 = vmatpush1.msra.mxu0 0.0
    %388 = vmatprep.subr.mxu0 0.0
    %389 = vmatpush1.msra.mxu0 0.0
    %390 = vmatprep.subr.mxu0 0.0
    %391 = vmatpush1.msra.mxu0 0.0
    %392 = vmatprep.subr.mxu0 0.0
    %393 = vmatpush1.msra.mxu0 0.0
    %394 = vmatprep.subr.mxu0 0.0
    %395 = vmatpush1.msra.mxu0 0.0
    %396 = vmatprep.subr.mxu0 0.0
    %397 = vmatpush1.msra.mxu0 0.0
    %398 = vmatprep.subr.mxu0 0.0
    %399 = vmatpush1.msra.mxu0 0.0
    %400 = vmatprep.subr.mxu0 0.0
    %401 = vmatpush1.msra.mxu0 0.0
    %402 = vmatprep.subr.mxu0 0.0
    %403 = vmatpush1.msra.mxu0 0.0
    %404 = vmatprep.subr.mxu0 0.0
    %405 = vmatpush1.msra.mxu0 0.0
    %406 = vmatprep.subr.mxu0 0.0
    %407 = vmatpush1.msra.mxu0 0.0
    %408 = vmatprep.subr.mxu0 0.0
    %409 = vmatpush1.msra.mxu0 0.0
    %410 = vmatprep.subr.mxu0 0.0
    %411 = vmatpush1.msra.mxu0 0.0
    %412 = vmatprep.subr.mxu0 0.0
    %413 = vmatpush1.msra.mxu0 0.0
    %414 = vmatprep.subr.mxu0 0.0
    %415 = vmatpush1.msra.mxu0 0.0
    %416 = vmatprep.subr.mxu0 0.0
    %417 = vmatpush1.msra.mxu0 0.0
    %418 = vmatprep.subr.mxu0 0.0
    %419 = vmatpush1.msra.mxu0 0.0
    %420 = vmatprep.subr.mxu0 0.0
    %421 = vmatpush1.msra.mxu0 0.0
    %422 = vmatprep.subr.mxu0 0.0
    %423 = vmatpush1.msra.mxu0 0.0
    %424 = vmatprep.subr.mxu0 0.0
    %425 = vmatpush1.msra.mxu0 0.0
    %426 = vmatprep.subr.mxu0 0.0
    %427 = vmatpush1.msra.mxu0 0.0
    %428 = vmatprep.subr.mxu0 0.0
    %429 = vmatpush1.msra.mxu0 0.0
    %430 = vmatprep.subr.mxu0 0.0
    %431 = vmatpush1.msra.mxu0 0.0
    %432 = vmatprep.subr.mxu0 0.0
    %433 = vmatpush1.msra.mxu0 0.0
    %434 = vmatprep.subr.mxu0 0.0
    %435 = vmatpush1.msra.mxu0 0.0
    %436 = vmatprep.subr.mxu0 0.0
    %437 = vmatpush1.msra.mxu0 0.0
    %438 = vmatprep.subr.mxu0 0.0
    %439 = vmatpush1.msra.mxu0 0.0
    %440 = vmatprep.subr.mxu0 0.0
    %441 = vmatpush1.msra.mxu0 0.0
    %442 = vmatprep.mubr.f32.mxu0 0.0
    %443 = vmatmul.mubr.f32.gmra.mrb[0].mxu0 %v376
    %v444 = vpop.f32.mrb[0].mxu0
    %v445 = vadd.f32 %v374, %v444
    %v446 = vpop.f32.mrb[0].mxu0
    %447 = vdwg.mxu0
    %v448 = vxor.u32 %v445, 2147483648
    %v449 = vmul.f32 %v448, 1.442695
    %v450 = vpow.pop %v449
    %v451 = vadd.f32 %v450, 1.0
    %v452 = vrcp.pop %v451
    %v453 = vmul.f32 1.0, %v452
    %v454 = vtanh.pop %v445
    %456 = vrot.lane.b32.xlu0 %v372, 32
    %v457 = vpop.permute.xlu0 %456
    %v459 = vmul.f32 %v453, %v457
    %461 = vrot.lane.b32.xlu0 %v454, 64
    %v462 = vpop.permute.xlu0 %461
    %v464 = vmul.f32 %v453, %v462
    %466 = vrot.lane.b32.xlu0 %v464, 32
    %v467 = vpop.permute.xlu0 %466
    %v469 = vadd.f32 %v459, %v467
    %v470 = vtanh.pop %v469
    %472 = vrot.lane.b32.xlu0 %v470, 64
    %v473 = vpop.permute.xlu0 %472
    %v475 = vmul.f32 %v453, %v473
    %477 = vrot.lane.b32.xlu0 %v475, 32
    %v478 = vpop.permute.xlu0 %477
    %s480 = scalar_lea.vmem [#allocation3], 4
    %481 = vst.msk [vmem:[%s480] sm:$0x3] %vm246, %v478
    %482 = vst.msk [vmem:[#allocation7] sm:$0x3] %vm246, %v478
    %484 = vrot.lane.b32.xlu0 %v469, 96
    %v485 = vpop.permute.xlu0 %484
    %487 = vst.msk [vmem:[#allocation9] sm:$0x3] %vm246, %v485
    %v488 = vld [vmem:[#allocation7] sm:$0x3]
    %v489 = vld [vmem:[#allocation9] sm:$0x3]
    %s490 = scalar_lea.vmem [#allocation2], 6
    %v491 = vld [vmem:[%s490] sm:$0x3]
    %v493 = vsel %vm140, %v488, 0
    %495 = vmatprep.subr.mxu0 0.0
    %496 = vmatpush1.msra.mxu0 %v133
    %497 = vmatprep.subr.mxu0 0.0
    %498 = vmatpush1.msra.mxu0 %v134
    %499 = vmatprep.subr.mxu0 0.0
    %500 = vmatpush1.msra.mxu0 %v135
    %501 = vmatprep.subr.mxu0 0.0
    %502 = vmatpush1.msra.mxu0 %v136
    %503 = vmatprep.subr.mxu0 0.0
    %504 = vmatpush1.msra.mxu0 0.0
    %505 = vmatprep.subr.mxu0 0.0
    %506 = vmatpush1.msra.mxu0 0.0
    %507 = vmatprep.subr.mxu0 0.0
    %508 = vmatpush1.msra.mxu0 0.0
    %509 = vmatprep.subr.mxu0 0.0
    %510 = vmatpush1.msra.mxu0 0.0
    %511 = vmatprep.subr.mxu0 0.0
    %512 = vmatpush1.msra.mxu0 0.0
    %513 = vmatprep.subr.mxu0 0.0
    %514 = vmatpush1.msra.mxu0 0.0
    %515 = vmatprep.subr.mxu0 0.0
    %516 = vmatpush1.msra.mxu0 0.0
    %517 = vmatprep.subr.mxu0 0.0
    %518 = vmatpush1.msra.mxu0 0.0
    %519 = vmatprep.subr.mxu0 0.0
    %520 = vmatpush1.msra.mxu0 0.0
    %521 = vmatprep.subr.mxu0 0.0
    %522 = vmatpush1.msra.mxu0 0.0
    %523 = vmatprep.subr.mxu0 0.0
    %524 = vmatpush1.msra.mxu0 0.0
    %525 = vmatprep.subr.mxu0 0.0
    %526 = vmatpush1.msra.mxu0 0.0
    %527 = vmatprep.subr.mxu0 0.0
    %528 = vmatpush1.msra.mxu0 0.0
    %529 = vmatprep.subr.mxu0 0.0
    %530 = vmatpush1.msra.mxu0 0.0
    %531 = vmatprep.subr.mxu0 0.0
    %532 = vmatpush1.msra.mxu0 0.0
    %533 = vmatprep.subr.mxu0 0.0
    %534 = vmatpush1.msra.mxu0 0.0
    %535 = vmatprep.subr.mxu0 0.0
    %536 = vmatpush1.msra.mxu0 0.0
    %537 = vmatprep.subr.mxu0 0.0
    %538 = vmatpush1.msra.mxu0 0.0
    %539 = vmatprep.subr.mxu0 0.0
    %540 = vmatpush1.msra.mxu0 0.0
    %541 = vmatprep.subr.mxu0 0.0
    %542 = vmatpush1.msra.mxu0 0.0
    %543 = vmatprep.subr.mxu0 0.0
    %544 = vmatpush1.msra.mxu0 0.0
    %545 = vmatprep.subr.mxu0 0.0
    %546 = vmatpush1.msra.mxu0 0.0
    %547 = vmatprep.subr.mxu0 0.0
    %548 = vmatpush1.msra.mxu0 0.0
    %549 = vmatprep.subr.mxu0 0.0
    %550 = vmatpush1.msra.mxu0 0.0
    %551 = vmatprep.subr.mxu0 0.0
    %552 = vmatpush1.msra.mxu0 0.0
    %553 = vmatprep.subr.mxu0 0.0
    %554 = vmatpush1.msra.mxu0 0.0
    %555 = vmatprep.subr.mxu0 0.0
    %556 = vmatpush1.msra.mxu0 0.0
    %557 = vmatprep.subr.mxu0 0.0
    %558 = vmatpush1.msra.mxu0 0.0
    %559 = vmatprep.mubr.f32.mxu0 0.0
    %560 = vmatmul.mubr.f32.gmra.mrb[0].mxu0 %v493
    %v561 = vpop.f32.mrb[0].mxu0
    %v562 = vadd.f32 %v491, %v561
    %v563 = vpop.f32.mrb[0].mxu0
    %564 = vdwg.mxu0
    %v565 = vxor.u32 %v562, 2147483648
    %v566 = vmul.f32 %v565, 1.442695
    %v567 = vpow.pop %v566
    %v568 = vadd.f32 %v567, 1.0
    %v569 = vrcp.pop %v568
    %v570 = vmul.f32 1.0, %v569
    %v571 = vtanh.pop %v562
    %573 = vrot.lane.b32.xlu0 %v489, 32
    %v574 = vpop.permute.xlu0 %573
    %v576 = vmul.f32 %v570, %v574
    %578 = vrot.lane.b32.xlu0 %v571, 64
    %v579 = vpop.permute.xlu0 %578
    %v581 = vmul.f32 %v570, %v579
    %583 = vrot.lane.b32.xlu0 %v581, 32
    %v584 = vpop.permute.xlu0 %583
    %v586 = vadd.f32 %v576, %v584
    %v587 = vtanh.pop %v586
    %589 = vrot.lane.b32.xlu0 %v587, 64
    %v590 = vpop.permute.xlu0 %589
    %v592 = vmul.f32 %v570, %v590
    %594 = vrot.lane.b32.xlu0 %v592, 32
    %v595 = vpop.permute.xlu0 %594
    %s597 = scalar_lea.vmem [#allocation3], 6
    %598 = vst.msk [vmem:[%s597] sm:$0x3] %vm246, %v595
    %599 = vst.msk [vmem:[#allocation7] sm:$0x3] %vm246, %v595
    %601 = vrot.lane.b32.xlu0 %v586, 96
    %v602 = vpop.permute.xlu0 %601
    %604 = vst.msk [vmem:[#allocation9] sm:$0x3] %vm246, %v602
    %v605 = vld [vmem:[#allocation7] sm:$0x3]
    %v606 = vld [vmem:[#allocation9] sm:$0x3]
    %s607 = scalar_lea.vmem [#allocation2], 8
    %v608 = vld [vmem:[%s607] sm:$0x3]
    %v610 = vsel %vm140, %v605, 0
    %612 = vmatprep.subr.mxu0 0.0
    %613 = vmatpush1.msra.mxu0 %v133
    %614 = vmatprep.subr.mxu0 0.0
    %615 = vmatpush1.msra.mxu0 %v134
    %616 = vmatprep.subr.mxu0 0.0
    %617 = vmatpush1.msra.mxu0 %v135
    %618 = vmatprep.subr.mxu0 0.0
    %619 = vmatpush1.msra.mxu0 %v136
    %620 = vmatprep.subr.mxu0 0.0
    %621 = vmatpush1.msra.mxu0 0.0
    %622 = vmatprep.subr.mxu0 0.0
    %623 = vmatpush1.msra.mxu0 0.0
    %624 = vmatprep.subr.mxu0 0.0
    %625 = vmatpush1.msra.mxu0 0.0
    %626 = vmatprep.subr.mxu0 0.0
    %627 = vmatpush1.msra.mxu0 0.0
    %628 = vmatprep.subr.mxu0 0.0
    %629 = vmatpush1.msra.mxu0 0.0
    %630 = vmatprep.subr.mxu0 0.0
    %631 = vmatpush1.msra.mxu0 0.0
    %632 = vmatprep.subr.mxu0 0.0
    %633 = vmatpush1.msra.mxu0 0.0
    %634 = vmatprep.subr.mxu0 0.0
    %635 = vmatpush1.msra.mxu0 0.0
    %636 = vmatprep.subr.mxu0 0.0
    %637 = vmatpush1.msra.mxu0 0.0
    %638 = vmatprep.subr.mxu0 0.0
    %639 = vmatpush1.msra.mxu0 0.0
    %640 = vmatprep.subr.mxu0 0.0
    %641 = vmatpush1.msra.mxu0 0.0
    %642 = vmatprep.subr.mxu0 0.0
    %643 = vmatpush1.msra.mxu0 0.0
    %644 = vmatprep.subr.mxu0 0.0
    %645 = vmatpush1.msra.mxu0 0.0
    %646 = vmatprep.subr.mxu0 0.0
    %647 = vmatpush1.msra.mxu0 0.0
    %648 = vmatprep.subr.mxu0 0.0
    %649 = vmatpush1.msra.mxu0 0.0
    %650 = vmatprep.subr.mxu0 0.0
    %651 = vmatpush1.msra.mxu0 0.0
    %652 = vmatprep.subr.mxu0 0.0
    %653 = vmatpush1.msra.mxu0 0.0
    %654 = vmatprep.subr.mxu0 0.0
    %655 = vmatpush1.msra.mxu0 0.0
    %656 = vmatprep.subr.mxu0 0.0
    %657 = vmatpush1.msra.mxu0 0.0
    %658 = vmatprep.subr.mxu0 0.0
    %659 = vmatpush1.msra.mxu0 0.0
    %660 = vmatprep.subr.mxu0 0.0
    %661 = vmatpush1.msra.mxu0 0.0
    %662 = vmatprep.subr.mxu0 0.0
    %663 = vmatpush1.msra.mxu0 0.0
    %664 = vmatprep.subr.mxu0 0.0
    %665 = vmatpush1.msra.mxu0 0.0
    %666 = vmatprep.subr.mxu0 0.0
    %667 = vmatpush1.msra.mxu0 0.0
    %668 = vmatprep.subr.mxu0 0.0
    %669 = vmatpush1.msra.mxu0 0.0
    %670 = vmatprep.subr.mxu0 0.0
    %671 = vmatpush1.msra.mxu0 0.0
    %672 = vmatprep.subr.mxu0 0.0
    %673 = vmatpush1.msra.mxu0 0.0
    %674 = vmatprep.subr.mxu0 0.0
    %675 = vmatpush1.msra.mxu0 0.0
    %676 = vmatprep.mubr.f32.mxu0 0.0
    %677 = vmatmul.mubr.f32.gmra.mrb[0].mxu0 %v610
    %v678 = vpop.f32.mrb[0].mxu0
    %v679 = vadd.f32 %v608, %v678
    %v680 = vpop.f32.mrb[0].mxu0
    %681 = vdwg.mxu0
    %v682 = vxor.u32 %v679, 2147483648
    %v683 = vmul.f32 %v682, 1.442695
    %v684 = vpow.pop %v683
    %v685 = vadd.f32 %v684, 1.0
    %v686 = vrcp.pop %v685
    %v687 = vmul.f32 1.0, %v686
    %v688 = vtanh.pop %v679
    %690 = vrot.lane.b32.xlu0 %v606, 32
    %v691 = vpop.permute.xlu0 %690
    %v693 = vmul.f32 %v687, %v691
    %695 = vrot.lane.b32.xlu0 %v688, 64
    %v696 = vpop.permute.xlu0 %695
    %v698 = vmul.f32 %v687, %v696
    %700 = vrot.lane.b32.xlu0 %v698, 32
    %v701 = vpop.permute.xlu0 %700
    %v703 = vadd.f32 %v693, %v701
    %v704 = vtanh.pop %v703
    %706 = vrot.lane.b32.xlu0 %v704, 64
    %v707 = vpop.permute.xlu0 %706
    %v709 = vmul.f32 %v687, %v707
    %711 = vrot.lane.b32.xlu0 %v709, 32
    %v712 = vpop.permute.xlu0 %711
    %s714 = scalar_lea.vmem [#allocation3], 8
    %715 = vst.msk [vmem:[%s714] sm:$0x3] %vm246, %v712
    %716 = vst.msk [vmem:[#allocation7] sm:$0x3] %vm246, %v712
    %718 = vrot.lane.b32.xlu0 %v703, 96
    %v719 = vpop.permute.xlu0 %718
    %721 = vst.msk [vmem:[#allocation9] sm:$0x3] %vm246, %v719
    %v722 = vld [vmem:[#allocation7] sm:$0x3]
    %v723 = vld [vmem:[#allocation9] sm:$0x3]
    %s724 = scalar_lea.vmem [#allocation2], 10
    %v725 = vld [vmem:[%s724] sm:$0x3]
    %v727 = vsel %vm140, %v722, 0
    %729 = vmatprep.subr.mxu0 0.0
    %730 = vmatpush1.msra.mxu0 %v133
    %731 = vmatprep.subr.mxu0 0.0
    %732 = vmatpush1.msra.mxu0 %v134
    %733 = vmatprep.subr.mxu0 0.0
    %734 = vmatpush1.msra.mxu0 %v135
    %735 = vmatprep.subr.mxu0 0.0
    %736 = vmatpush1.msra.mxu0 %v136
    %737 = vmatprep.subr.mxu0 0.0
    %738 = vmatpush1.msra.mxu0 0.0
    %739 = vmatprep.subr.mxu0 0.0
    %740 = vmatpush1.msra.mxu0 0.0
    %741 = vmatprep.subr.mxu0 0.0
    %742 = vmatpush1.msra.mxu0 0.0
    %743 = vmatprep.subr.mxu0 0.0
    %744 = vmatpush1.msra.mxu0 0.0
    %745 = vmatprep.subr.mxu0 0.0
    %746 = vmatpush1.msra.mxu0 0.0
    %747 = vmatprep.subr.mxu0 0.0
    %748 = vmatpush1.msra.mxu0 0.0
    %749 = vmatprep.subr.mxu0 0.0
    %750 = vmatpush1.msra.mxu0 0.0
    %751 = vmatprep.subr.mxu0 0.0
    %752 = vmatpush1.msra.mxu0 0.0
    %753 = vmatprep.subr.mxu0 0.0
    %754 = vmatpush1.msra.mxu0 0.0
    %755 = vmatprep.subr.mxu0 0.0
    %756 = vmatpush1.msra.mxu0 0.0
    %757 = vmatprep.subr.mxu0 0.0
    %758 = vmatpush1.msra.mxu0 0.0
    %759 = vmatprep.subr.mxu0 0.0
    %760 = vmatpush1.msra.mxu0 0.0
    %761 = vmatprep.subr.mxu0 0.0
    %762 = vmatpush1.msra.mxu0 0.0
    %763 = vmatprep.subr.mxu0 0.0
    %764 = vmatpush1.msra.mxu0 0.0
    %765 = vmatprep.subr.mxu0 0.0
    %766 = vmatpush1.msra.mxu0 0.0
    %767 = vmatprep.subr.mxu0 0.0
    %768 = vmatpush1.msra.mxu0 0.0
    %769 = vmatprep.subr.mxu0 0.0
    %770 = vmatpush1.msra.mxu0 0.0
    %771 = vmatprep.subr.mxu0 0.0
    %772 = vmatpush1.msra.mxu0 0.0
    %773 = vmatprep.subr.mxu0 0.0
    %774 = vmatpush1.msra.mxu0 0.0
    %775 = vmatprep.subr.mxu0 0.0
    %776 = vmatpush1.msra.mxu0 0.0
    %777 = vmatprep.subr.mxu0 0.0
    %778 = vmatpush1.msra.mxu0 0.0
    %779 = vmatprep.subr.mxu0 0.0
    %780 = vmatpush1.msra.mxu0 0.0
    %781 = vmatprep.subr.mxu0 0.0
    %782 = vmatpush1.msra.mxu0 0.0
    %783 = vmatprep.subr.mxu0 0.0
    %784 = vmatpush1.msra.mxu0 0.0
    %785 = vmatprep.subr.mxu0 0.0
    %786 = vmatpush1.msra.mxu0 0.0
    %787 = vmatprep.subr.mxu0 0.0
    %788 = vmatpush1.msra.mxu0 0.0
    %789 = vmatprep.subr.mxu0 0.0
    %790 = vmatpush1.msra.mxu0 0.0
    %791 = vmatprep.subr.mxu0 0.0
    %792 = vmatpush1.msra.mxu0 0.0
    %793 = vmatprep.mubr.f32.mxu0 0.0
    %794 = vmatmul.mubr.f32.gmra.mrb[0].mxu0 %v727
    %v795 = vpop.f32.mrb[0].mxu0
    %v796 = vadd.f32 %v725, %v795
    %v797 = vpop.f32.mrb[0].mxu0
    %798 = vdwg.mxu0
    %v799 = vxor.u32 %v796, 2147483648
    %v800 = vmul.f32 %v799, 1.442695
    %v801 = vpow.pop %v800
    %v802 = vadd.f32 %v801, 1.0
    %v803 = vrcp.pop %v802
    %v804 = vmul.f32 1.0, %v803
    %v805 = vtanh.pop %v796
    %807 = vrot.lane.b32.xlu0 %v723, 32
    %v808 = vpop.permute.xlu0 %807
    %v810 = vmul.f32 %v804, %v808
    %812 = vrot.lane.b32.xlu0 %v805, 64
    %v813 = vpop.permute.xlu0 %812
    %v815 = vmul.f32 %v804, %v813
    %817 = vrot.lane.b32.xlu0 %v815, 32
    %v818 = vpop.permute.xlu0 %817
    %v820 = vadd.f32 %v810, %v818
    %v821 = vtanh.pop %v820
    %823 = vrot.lane.b32.xlu0 %v821, 64
    %v824 = vpop.permute.xlu0 %823
    %v826 = vmul.f32 %v804, %v824
    %828 = vrot.lane.b32.xlu0 %v826, 32
    %v829 = vpop.permute.xlu0 %828
    %s831 = scalar_lea.vmem [#allocation3], 10
    %832 = vst.msk [vmem:[%s831] sm:$0x3] %vm246, %v829
    %833 = vst.msk [vmem:[#allocation7] sm:$0x3] %vm246, %v829
    %835 = vrot.lane.b32.xlu0 %v820, 96
    %v836 = vpop.permute.xlu0 %835
    %838 = vst.msk [vmem:[#allocation9] sm:$0x3] %vm246, %v836
    %v839 = vld [vmem:[#allocation7] sm:$0x3]
    %v840 = vld [vmem:[#allocation9] sm:$0x3]
    %s841 = scalar_lea.vmem [#allocation2], 12
    %v842 = vld [vmem:[%s841] sm:$0x3]
    %v844 = vsel %vm140, %v839, 0
    %846 = vmatprep.subr.mxu0 0.0
    %847 = vmatpush1.msra.mxu0 %v133
    %848 = vmatprep.subr.mxu0 0.0
    %849 = vmatpush1.msra.mxu0 %v134
    %850 = vmatprep.subr.mxu0 0.0
    %851 = vmatpush1.msra.mxu0 %v135
    %852 = vmatprep.subr.mxu0 0.0
    %853 = vmatpush1.msra.mxu0 %v136
    %854 = vmatprep.subr.mxu0 0.0
    %855 = vmatpush1.msra.mxu0 0.0
    %856 = vmatprep.subr.mxu0 0.0
    %857 = vmatpush1.msra.mxu0 0.0
    %858 = vmatprep.subr.mxu0 0.0
    %859 = vmatpush1.msra.mxu0 0.0
    %860 = vmatprep.subr.mxu0 0.0
    %861 = vmatpush1.msra.mxu0 0.0
    %862 = vmatprep.subr.mxu0 0.0
    %863 = vmatpush1.msra.mxu0 0.0
    %864 = vmatprep.subr.mxu0 0.0
    %865 = vmatpush1.msra.mxu0 0.0
    %866 = vmatprep.subr.mxu0 0.0
    %867 = vmatpush1.msra.mxu0 0.0
    %868 = vmatprep.subr.mxu0 0.0
    %869 = vmatpush1.msra.mxu0 0.0
    %870 = vmatprep.subr.mxu0 0.0
    %871 = vmatpush1.msra.mxu0 0.0
    %872 = vmatprep.subr.mxu0 0.0
    %873 = vmatpush1.msra.mxu0 0.0
    %874 = vmatprep.subr.mxu0 0.0
    %875 = vmatpush1.msra.mxu0 0.0
    %876 = vmatprep.subr.mxu0 0.0
    %877 = vmatpush1.msra.mxu0 0.0
    %878 = vmatprep.subr.mxu0 0.0
    %879 = vmatpush1.msra.mxu0 0.0
    %880 = vmatprep.subr.mxu0 0.0
    %881 = vmatpush1.msra.mxu0 0.0
    %882 = vmatprep.subr.mxu0 0.0
    %883 = vmatpush1.msra.mxu0 0.0
    %884 = vmatprep.subr.mxu0 0.0
    %885 = vmatpush1.msra.mxu0 0.0
    %886 = vmatprep.subr.mxu0 0.0
    %887 = vmatpush1.msra.mxu0 0.0
    %888 = vmatprep.subr.mxu0 0.0
    %889 = vmatpush1.msra.mxu0 0.0
    %890 = vmatprep.subr.mxu0 0.0
    %891 = vmatpush1.msra.mxu0 0.0
    %892 = vmatprep.subr.mxu0 0.0
    %893 = vmatpush1.msra.mxu0 0.0
    %894 = vmatprep.subr.mxu0 0.0
    %895 = vmatpush1.msra.mxu0 0.0
    %896 = vmatprep.subr.mxu0 0.0
    %897 = vmatpush1.msra.mxu0 0.0
    %898 = vmatprep.subr.mxu0 0.0
    %899 = vmatpush1.msra.mxu0 0.0
    %900 = vmatprep.subr.mxu0 0.0
    %901 = vmatpush1.msra.mxu0 0.0
    %902 = vmatprep.subr.mxu0 0.0
    %903 = vmatpush1.msra.mxu0 0.0
    %904 = vmatprep.subr.mxu0 0.0
    %905 = vmatpush1.msra.mxu0 0.0
    %906 = vmatprep.subr.mxu0 0.0
    %907 = vmatpush1.msra.mxu0 0.0
    %908 = vmatprep.subr.mxu0 0.0
    %909 = vmatpush1.msra.mxu0 0.0
    %910 = vmatprep.mubr.f32.mxu0 0.0
    %911 = vmatmul.mubr.f32.gmra.mrb[0].mxu0 %v844
    %v912 = vpop.f32.mrb[0].mxu0
    %v913 = vadd.f32 %v842, %v912
    %v914 = vpop.f32.mrb[0].mxu0
    %915 = vdwg.mxu0
    %v916 = vxor.u32 %v913, 2147483648
    %v917 = vmul.f32 %v916, 1.442695
    %v918 = vpow.pop %v917
    %v919 = vadd.f32 %v918, 1.0
    %v920 = vrcp.pop %v919
    %v921 = vmul.f32 1.0, %v920
    %v922 = vtanh.pop %v913
    %924 = vrot.lane.b32.xlu0 %v840, 32
    %v925 = vpop.permute.xlu0 %924
    %v927 = vmul.f32 %v921, %v925
    %929 = vrot.lane.b32.xlu0 %v922, 64
    %v930 = vpop.permute.xlu0 %929
    %v932 = vmul.f32 %v921, %v930
    %934 = vrot.lane.b32.xlu0 %v932, 32
    %v935 = vpop.permute.xlu0 %934
    %v937 = vadd.f32 %v927, %v935
    %v938 = vtanh.pop %v937
    %940 = vrot.lane.b32.xlu0 %v938, 64
    %v941 = vpop.permute.xlu0 %940
    %v943 = vmul.f32 %v921, %v941
    %945 = vrot.lane.b32.xlu0 %v943, 32
    %v946 = vpop.permute.xlu0 %945
    %s948 = scalar_lea.vmem [#allocation3], 12
    %949 = vst.msk [vmem:[%s948] sm:$0x3] %vm246, %v946
    %950 = vst.msk [vmem:[#allocation7] sm:$0x3] %vm246, %v946
    %952 = vrot.lane.b32.xlu0 %v937, 96
    %v953 = vpop.permute.xlu0 %952
    %955 = vst.msk [vmem:[#allocation9] sm:$0x3] %vm246, %v953
    %v956 = vld [vmem:[#allocation7] sm:$0x3]
    %v957 = vld [vmem:[#allocation9] sm:$0x3]
    %s958 = scalar_lea.vmem [#allocation2], 14
    %v959 = vld [vmem:[%s958] sm:$0x3]
    %v961 = vsel %vm140, %v956, 0
    %963 = vmatprep.subr.mxu0 0.0
    %964 = vmatpush1.msra.mxu0 %v133
    %965 = vmatprep.subr.mxu0 0.0
    %966 = vmatpush1.msra.mxu0 %v134
    %967 = vmatprep.subr.mxu0 0.0
    %968 = vmatpush1.msra.mxu0 %v135
    %969 = vmatprep.subr.mxu0 0.0
    %970 = vmatpush1.msra.mxu0 %v136
    %971 = vmatprep.subr.mxu0 0.0
    %972 = vmatpush1.msra.mxu0 0.0
    %973 = vmatprep.subr.mxu0 0.0
    %974 = vmatpush1.msra.mxu0 0.0
    %975 = vmatprep.subr.mxu0 0.0
    %976 = vmatpush1.msra.mxu0 0.0
    %977 = vmatprep.subr.mxu0 0.0
    %978 = vmatpush1.msra.mxu0 0.0
    %979 = vmatprep.subr.mxu0 0.0
    %980 = vmatpush1.msra.mxu0 0.0
    %981 = vmatprep.subr.mxu0 0.0
    %982 = vmatpush1.msra.mxu0 0.0
    %983 = vmatprep.subr.mxu0 0.0
    %984 = vmatpush1.msra.mxu0 0.0
    %985 = vmatprep.subr.mxu0 0.0
    %986 = vmatpush1.msra.mxu0 0.0
    %987 = vmatprep.subr.mxu0 0.0
    %988 = vmatpush1.msra.mxu0 0.0
    %989 = vmatprep.subr.mxu0 0.0
    %990 = vmatpush1.msra.mxu0 0.0
    %991 = vmatprep.subr.mxu0 0.0
    %992 = vmatpush1.msra.mxu0 0.0
    %993 = vmatprep.subr.mxu0 0.0
    %994 = vmatpush1.msra.mxu0 0.0
    %995 = vmatprep.subr.mxu0 0.0
    %996 = vmatpush1.msra.mxu0 0.0
    %997 = vmatprep.subr.mxu0 0.0
    %998 = vmatpush1.msra.mxu0 0.0
    %999 = vmatprep.subr.mxu0 0.0
    %1000 = vmatpush1.msra.mxu0 0.0
    %1001 = vmatprep.subr.mxu0 0.0
    %1002 = vmatpush1.msra.mxu0 0.0
    %1003 = vmatprep.subr.mxu0 0.0
    %1004 = vmatpush1.msra.mxu0 0.0
    %1005 = vmatprep.subr.mxu0 0.0
    %1006 = vmatpush1.msra.mxu0 0.0
    %1007 = vmatprep.subr.mxu0 0.0
    %1008 = vmatpush1.msra.mxu0 0.0
    %1009 = vmatprep.subr.mxu0 0.0
    %1010 = vmatpush1.msra.mxu0 0.0
    %1011 = vmatprep.subr.mxu0 0.0
    %1012 = vmatpush1.msra.mxu0 0.0
    %1013 = vmatprep.subr.mxu0 0.0
    %1014 = vmatpush1.msra.mxu0 0.0
    %1015 = vmatprep.subr.mxu0 0.0
    %1016 = vmatpush1.msra.mxu0 0.0
    %1017 = vmatprep.subr.mxu0 0.0
    %1018 = vmatpush1.msra.mxu0 0.0
    %1019 = vmatprep.subr.mxu0 0.0
    %1020 = vmatpush1.msra.mxu0 0.0
    %1021 = vmatprep.subr.mxu0 0.0
    %1022 = vmatpush1.msra.mxu0 0.0
    %1023 = vmatprep.subr.mxu0 0.0
    %1024 = vmatpush1.msra.mxu0 0.0
    %1025 = vmatprep.subr.mxu0 0.0
    %1026 = vmatpush1.msra.mxu0 0.0
    %1027 = vmatprep.mubr.f32.mxu0 0.0
    %1028 = vmatmul.mubr.f32.gmra.mrb[0].mxu0 %v961
    %v1029 = vpop.f32.mrb[0].mxu0
    %v1030 = vadd.f32 %v959, %v1029
    %v1031 = vpop.f32.mrb[0].mxu0
    %1032 = vdwg.mxu0
    %v1033 = vxor.u32 %v1030, 2147483648
    %v1034 = vmul.f32 %v1033, 1.442695
    %v1035 = vpow.pop %v1034
    %v1036 = vadd.f32 %v1035, 1.0
    %v1037 = vrcp.pop %v1036
    %v1038 = vmul.f32 1.0, %v1037
    %v1039 = vtanh.pop %v1030
    %1041 = vrot.lane.b32.xlu0 %v957, 32
    %v1042 = vpop.permute.xlu0 %1041
    %v1044 = vmul.f32 %v1038, %v1042
    %1046 = vrot.lane.b32.xlu0 %v1039, 64
    %v1047 = vpop.permute.xlu0 %1046
    %v1049 = vmul.f32 %v1038, %v1047
    %1051 = vrot.lane.b32.xlu0 %v1049, 32
    %v1052 = vpop.permute.xlu0 %1051
    %v1054 = vadd.f32 %v1044, %v1052
    %v1055 = vtanh.pop %v1054
    %1057 = vrot.lane.b32.xlu0 %v1055, 64
    %v1058 = vpop.permute.xlu0 %1057
    %v1060 = vmul.f32 %v1038, %v1058
    %1062 = vrot.lane.b32.xlu0 %v1060, 32
    %v1063 = vpop.permute.xlu0 %1062
    %s1065 = scalar_lea.vmem [#allocation3], 14
    %1066 = vst.msk [vmem:[%s1065] sm:$0x3] %vm246, %v1063
    %1067 = vst.msk [vmem:[#allocation7] sm:$0x3] %vm246, %v1063
    %1069 = vrot.lane.b32.xlu0 %v1054, 96
    %v1070 = vpop.permute.xlu0 %1069
    %1072 = vst.msk [vmem:[#allocation9] sm:$0x3] %vm246, %v1070
    %v1073 = vld [vmem:[#allocation3] sm:$0x3]
    %v1074 = vld [vmem:[#allocation3 + $0x2] sm:$0x3]
    %v1075 = vld [vmem:[#allocation3 + $0x4] sm:$0x3]
    %v1076 = vld [vmem:[#allocation3 + $0x6] sm:$0x3]
    %v1077 = vld [vmem:[#allocation3 + $0x8] sm:$0x3]
    %v1078 = vld [vmem:[#allocation3 + $0xa] sm:$0x3]
    %v1079 = vld [vmem:[#allocation3 + $0xc] sm:$0x3]
    %v1080 = vld [vmem:[#allocation3 + $0xe] sm:$0x3]
    %v1081 = vld [vmem:[%s5] sm:$0x1]
    %v1083 = vlaneseq
    %v1084 = vshrl.u32 %v1083, 7
    %v1085 = vsub.s32 0, %v1084
    %v1086 = vrot.slane %v1081, %v1085
    %v1088 = vmul.f32 %v1073, %v1086
    %v1089 = vmul.f32 %v1074, %v1086
    %v1090 = vmul.f32 %v1075, %v1086
    %v1091 = vmul.f32 %v1076, %v1086
    %v1092 = vmul.f32 %v1077, %v1086
    %v1093 = vmul.f32 %v1078, %v1086
    %v1094 = vmul.f32 %v1079, %v1086
    %v1095 = vmul.f32 %v1080, %v1086
    %v1096 = vsel %vm246, %v1088, 0.0
    %1097 = vadd.xlane.f32.xlu0 %v1096
    %v1098 = vpop.xlane.xlu0 %1097
    %v1099 = vsel %vm246, %v1089, 0.0
    %1100 = vadd.xlane.f32.xlu0 %v1099
    %v1101 = vpop.xlane.xlu0 %1100
    %v1102 = vsel %vm246, %v1090, 0.0
    %1103 = vadd.xlane.f32.xlu0 %v1102
    %v1104 = vpop.xlane.xlu0 %1103
    %v1105 = vsel %vm246, %v1091, 0.0
    %1106 = vadd.xlane.f32.xlu0 %v1105
    %v1107 = vpop.xlane.xlu0 %1106
    %v1108 = vsel %vm246, %v1092, 0.0
    %1109 = vadd.xlane.f32.xlu0 %v1108
    %v1110 = vpop.xlane.xlu0 %1109
    %v1111 = vsel %vm246, %v1093, 0.0
    %1112 = vadd.xlane.f32.xlu0 %v1111
    %v1113 = vpop.xlane.xlu0 %1112
    %v1114 = vsel %vm246, %v1094, 0.0
    %1115 = vadd.xlane.f32.xlu0 %v1114
    %v1116 = vpop.xlane.xlu0 %1115
    %v1117 = vsel %vm246, %v1095, 0.0
    %1118 = vadd.xlane.f32.xlu0 %v1117
    %v1119 = vpop.xlane.xlu0 %1118
    %v1120 = vld [vmem:[#allocation6] sm:$0x1]
    %v1122 = vlaneseq
    %v1123 = vshrl.u32 %v1122, 7
    %v1124 = vsub.s32 0, %v1123
    %v1125 = vrot.slane %v1120, %v1124
    %1126 = vset.pattern.permute.xlu0 0
    %1127 = vperm.xlu0 %1126, %v1125
    %v1128 = vpop.permute.xlu0 %1127
    %v1130 = vadd.f32 %v1098, %v1128
    %v1131 = vadd.f32 %v1101, %v1128
    %v1132 = vadd.f32 %v1104, %v1128
    %v1133 = vadd.f32 %v1107, %v1128
    %v1134 = vadd.f32 %v1110, %v1128
    %v1135 = vadd.f32 %v1113, %v1128
    %v1136 = vadd.f32 %v1116, %v1128
    %v1137 = vadd.f32 %v1119, %v1128
    %v1138 = vtanh.pop %v1130
    %v1139 = vtanh.pop %v1131
    %v1140 = vtanh.pop %v1132
    %v1141 = vtanh.pop %v1133
    %v1142 = vtanh.pop %v1134
    %v1143 = vtanh.pop %v1135
    %v1144 = vtanh.pop %v1136
    %v1145 = vtanh.pop %v1137
    %v1154 = vlaneseq
    %v1155 = vand.u32 %v1154, 127
    %v1156 = vlaneseq
    %v1157 = vshrl.u32 %v1156, 7
    %v1158 = vsub.s32 %v1155, %v1157
    %v1159 = vrot.slane %v1138, %v1158
    %v1160 = vlaneseq
    %v1161 = vshrl.u32 %v1160, 7
    %v1162 = vsub.s32 %v1155, %v1161
    %v1163 = vrot.slane %v1139, %v1162
    %v1164 = vlaneseq
    %v1165 = vshrl.u32 %v1164, 7
    %v1166 = vsub.s32 %v1155, %v1165
    %v1167 = vrot.slane %v1140, %v1166
    %v1168 = vlaneseq
    %v1169 = vshrl.u32 %v1168, 7
    %v1170 = vsub.s32 %v1155, %v1169
    %v1171 = vrot.slane %v1141, %v1170
    %v1172 = vlaneseq
    %v1173 = vshrl.u32 %v1172, 7
    %v1174 = vsub.s32 %v1155, %v1173
    %v1175 = vrot.slane %v1142, %v1174
    %v1176 = vlaneseq
    %v1177 = vshrl.u32 %v1176, 7
    %v1178 = vsub.s32 %v1155, %v1177
    %v1179 = vrot.slane %v1143, %v1178
    %v1180 = vlaneseq
    %v1181 = vshrl.u32 %v1180, 7
    %v1182 = vsub.s32 %v1155, %v1181
    %v1183 = vrot.slane %v1144, %v1182
    %v1184 = vlaneseq
    %v1185 = vshrl.u32 %v1184, 7
    %v1186 = vsub.s32 %v1155, %v1185
    %v1187 = vrot.slane %v1145, %v1186
    %vm1188 = vcmask 1041409
    %v1189 = vsel %vm1188, %v1163, %v1159
    %vm1190 = vcmask 1042434
    %v1191 = vsel %vm1190, %v1167, %v1189
    %vm1192 = vcmask 1043459
    %v1193 = vsel %vm1192, %v1171, %v1191
    %vm1194 = vcmask 1044484
    %v1195 = vsel %vm1194, %v1175, %v1193
    %vm1196 = vcmask 1045509
    %v1197 = vsel %vm1196, %v1179, %v1195
    %vm1198 = vcmask 1046534
    %v1199 = vsel %vm1198, %v1183, %v1197
    %vm1200 = vcmask 1047559
    %v1201 = vsel %vm1200, %v1187, %v1199
    %vm1203 = vcmask 15360
    %1204 = vst.msk [vmem:[%s9] sm:$0xff] %vm1203, %v1201
    // Predicated region
    $region38: #{lstm_forward.1} parent=1 // pred_check
      _
    $region39: #{lstm_forward.1} parent=1 // pred_check_branch
      %1206 = sbr.rel (0) target = $region41
    $region40: #{lstm_forward.1} parent=1 // pred_region
      _
    $region41: #{lstm_forward.1} parent=1 // pred_fallthru
      _
    // Predicated region
    $region42: #{lstm_forward.1} parent=1 // pred_check
      _
    $region43: #{lstm_forward.1} parent=1 // pred_check_branch
      %1208 = sbr.rel (0) target = $region45
    $region44: #{lstm_forward.1} parent=1 // pred_region
      %s1210 = ssub.s32 32, 32
      %1211 = vsyncadd [#allocation8], %s1210
      %s1213 = sshll.u32 [#allocation7], 4
      %s1214 = int_to_ptr.vmem [resolvable:$true] %s1213
      %1216 = dma.vmem_to_hbm [thread:$0]  %s1214, 32, %s10, [#allocation8]
    $region45: #{lstm_forward.1} parent=1 // pred_fallthru
      _
    // Predicated region
    $region46: #{lstm_forward.1} parent=1 // pred_check
      _
    $region47: #{lstm_forward.1} parent=1 // pred_check_branch
      %1218 = sbr.rel (0) target = $region49
    $region48: #{lstm_forward.1} parent=1 // pred_region
      %s1220 = ssub.s32 32, 32
      %1221 = vsyncadd [#allocation10], %s1220
      %s1223 = sshll.u32 [#allocation9], 4
      %s1224 = int_to_ptr.vmem [resolvable:$true] %s1223
      %1226 = dma.vmem_to_hbm [thread:$0]  %s1224, 32, %s11, [#allocation10]
    $region49: #{lstm_forward.1} parent=1 // pred_fallthru
      _
    // Predicated region
    $region50: #{lstm_forward.1} parent=1 // pred_check
      _
    $region51: #{lstm_forward.1} parent=1 // pred_check_branch
      %1228 = sbr.rel (0) target = $region53
    $region52: #{lstm_forward.1} parent=1 // pred_region
      _
    $region53: #{lstm_forward.1} parent=1 // pred_fallthru
      _
    // Predicated region
    $region54: #{lstm_forward.1} parent=1 // pred_check
      _
    $region55: #{lstm_forward.1} parent=1 // pred_check_branch
      %1230 = sbr.rel (0) target = $region57
    $region56: #{lstm_forward.1} parent=1 // pred_region
      %1231 = dma.done [#allocation8], 32
    $region57: #{lstm_forward.1} parent=1 // pred_fallthru
      _
    // Predicated region
    $region58: #{lstm_forward.1} parent=1 // pred_check
      _
    $region59: #{lstm_forward.1} parent=1 // pred_check_branch
      %1233 = sbr.rel (0) target = $region61
    $region60: #{lstm_forward.1} parent=1 // pred_region
      %1234 = dma.done [#allocation10], 32
    $region61: #{lstm_forward.1} parent=1 // pred_fallthru
      _
    %1235 = vsyncpa [#allocation8], 1
    %1236 = vsyncpa [#allocation10], 1

</llo_original>
